<compile_context>
chip_gen: v7x
topology: tpu7x:2x2x1
jax: 0.10.0
libtpu: 0.0.40
codegen_flags: <defaults>
</compile_context>

<pallas_src>
import jax
import jax.numpy as jnp
from jax.experimental import pallas as pl
from jax.experimental.pallas import tpu as pltpu


def polynet_kernel(xpad_ref, w1_ref, b1_ref, w2_ref, b2_ref, wfc_ref, bfc_ref,
                   o_ref, h1p_ref):
    # Static shape bookkeeping (Python ints at trace time).
    Bb = o_ref.shape[1]                      # batch lanes per block (multiple of 128)
    C_inp = xpad_ref.shape[1]                # padded input channels (8)
    C1 = w1_ref.shape[0]                     # 32
    K1 = w1_ref.shape[1] // C_inp            # 8
    C2 = w2_ref.shape[0]                     # 64
    K2 = w2_ref.shape[1] // C1               # 6
    L = xpad_ref.shape[2] // Bb - (K1 - 1)   # sequence length
    Lp = L // 2                              # pooled length
    l2 = (K2 - 1) // 2                       # conv2 'same' left pad

    xp = xpad_ref[0]                         # (C_inp, (L+K1-1)*Bb) f32

    # ---- conv1 ('same', k=K1) + ReLU: ONE im2col matmul ----------------------
    # RHS built in VMEM from a single copy of xpad: K1 lane-aligned slices
    # stacked along sublanes (each piece is 8 sublanes -> tile-aligned concat).
    rhs1 = jnp.concatenate(
        [xp[:, k * Bb: k * Bb + L * Bb] for k in range(K1)], axis=0)   # (K1*C_inp, L*Bb)
    h1 = jnp.dot(w1_ref[...], rhs1.astype(w1_ref.dtype),
                 preferred_element_type=jnp.float32)
    h1 = jnp.maximum(h1 + b1_ref[...], 0.0)                            # (C1, L*Bb) f32

    # ---- MaxPool1d(2) fused with conv2 'same' zero-pad ------------------------
    # Pure data movement: per-pair max of aligned 128-lane slices, stored into a
    # zero-initialised VMEM scratch at the padding offset (no selection matmul).
    h1p_ref[...] = jnp.zeros_like(h1p_ref)
    for p in range(Lp):
        a = h1[:, (2 * p) * Bb: (2 * p + 1) * Bb]
        b = h1[:, (2 * p + 1) * Bb: (2 * p + 2) * Bb]
        h1p_ref[:, (l2 + p) * Bb: (l2 + p + 1) * Bb] = (
            jnp.maximum(a, b).astype(h1p_ref.dtype))

    # ---- conv2 ('same', k=K2) + ReLU: ONE 192-deep im2col matmul --------------
    rhs2 = jnp.concatenate(
        [h1p_ref[:, k * Bb: k * Bb + Lp * Bb] for k in range(K2)], axis=0)  # (K2*C1, Lp*Bb)
    h2 = jnp.dot(w2_ref[...], rhs2, preferred_element_type=jnp.float32)
    h2 = jnp.maximum(h2 + b2_ref[...], 0.0)                                 # (C2, Lp*Bb) f32

    # ---- AdaptiveMaxPool1d(1): log-depth tree over aligned half-width slices --
    g = h2
    npos = Lp
    while npos > 1:
        if npos % 2 == 1:                     # fold the unpaired last block in
            g = jnp.concatenate(
                [jnp.maximum(g[:, :Bb], g[:, (npos - 1) * Bb:]),
                 g[:, Bb:(npos - 1) * Bb]], axis=1)
            npos -= 1
        half = npos // 2
        g = jnp.maximum(g[:, : half * Bb], g[:, half * Bb: npos * Bb])
        npos = half
    # g: (C2, Bb) f32

    # ---- Linear(64 -> 1) + sigmoid; one full-width (1, Bb) lane store ----------
    logit = jnp.dot(wfc_ref[...], g.astype(wfc_ref.dtype),
                    preferred_element_type=jnp.float32) + bfc_ref[...]      # (1, Bb)
    o_ref[...] = 1.0 / (1.0 + jnp.exp(-logit))


def make_polynet_forward(params, *, b_block=128):
    """Hoist all parameter-only preprocessing; return a jitted forward(x) -> (B,)."""
    w1, b1, w2, b2, wfc, bfc = params
    C1, C_in, K1 = w1.shape
    C2, _, K2 = w2.shape
    f32, bf16 = jnp.float32, jnp.bfloat16

    # Pad input channels up to the f32 sublane tile so in-kernel im2col pieces
    # are tile-aligned (zero channels are exact).
    C_inp = -(-C_in // 8) * 8
    w1p = jnp.zeros((C1, C_inp, K1), f32).at[:, :C_in, :].set(w1.astype(f32))
    # im2col-flattened weights: w_flat[o, k*C + c] = w[o, c, k]; bf16 MXU operands.
    w1f = jnp.transpose(w1p, (0, 2, 1)).reshape(C1, K1 * C_inp).astype(bf16)
    w2f = jnp.transpose(w2.astype(f32), (0, 2, 1)).reshape(C2, K2 * C1).astype(bf16)
    b1c = b1.reshape(C1, 1).astype(f32)
    b2c = b2.reshape(C2, 1).astype(f32)
    wfcb = wfc.reshape(1, C2).astype(bf16)
    bfcc = bfc.reshape(1, 1).astype(f32)

    # PyTorch 'same' padding: left = (K-1)//2, right = K-1-left (asymmetric, even K).
    l1 = (K1 - 1) // 2
    r1 = (K1 - 1) - l1

    @jax.jit
    def forward(x):
        B, _, L = x.shape
        assert L % 2 == 0, "MaxPool1d(2) path assumes an even sequence length"
        Lp = L // 2
        Lk = L + K1 - 1
        Mp2 = Lp + K2 - 1
        nb = -(-B // b_block)
        Bp = nb * b_block

        # (B, C_in, L) -> (nb, C_inp, Lk*b_block); lane = position*b_block + batch.
        xb = jnp.zeros((Bp, C_inp, L), f32).at[:B, :C_in, :].set(x.astype(f32))
        xpad = jnp.pad(xb, ((0, 0), (0, 0), (l1, r1)))          # (Bp, C_inp, Lk)
        xlane = (xpad.reshape(nb, b_block, C_inp, Lk)
                     .transpose(0, 2, 3, 1)
                     .reshape(nb, C_inp, Lk * b_block))

        out = pl.pallas_call(
            polynet_kernel,
            out_shape=jax.ShapeDtypeStruct((1, Bp), f32),
            grid=(nb,),
            in_specs=[
                pl.BlockSpec((1, C_inp, Lk * b_block), lambda i: (i, 0, 0)),
                # Weights/biases: same block every grid step -> stay VMEM-resident.
                pl.BlockSpec((C1, K1 * C_inp), lambda i: (0, 0)),
                pl.BlockSpec((C1, 1), lambda i: (0, 0)),
                pl.BlockSpec((C2, K2 * C1), lambda i: (0, 0)),
                pl.BlockSpec((C2, 1), lambda i: (0, 0)),
                pl.BlockSpec((1, C2), lambda i: (0, 0)),
                pl.BlockSpec((1, 1), lambda i: (0, 0)),
            ],
            out_specs=pl.BlockSpec((1, b_block), lambda i: (0, i)),
            scratch_shapes=[pltpu.VMEM((C1, Mp2 * b_block), bf16)],
            compiler_params=pltpu.CompilerParams(
                dimension_semantics=("parallel",)),
        )(xlane, w1f, b1c, w2f, b2c, wfcb, bfcc)

        return out[0, :B]    # matches .squeeze(-1) -> (B,)

    return forward


def polynet_reference(x, params):
    """Pure-JAX reference with identical semantics (correctness check)."""
    w1, b1, w2, b2, wfc, bfc = params
    K1, K2 = w1.shape[2], w2.shape[2]
    dn = ("NCH", "OIH", "NCH")
    h1 = jax.lax.conv_general_dilated(
        x, w1, window_strides=(1,),
        padding=[((K1 - 1) // 2, (K1 - 1) - (K1 - 1) // 2)],
        dimension_numbers=dn) + b1[None, :, None]
    h1 = jnp.maximum(h1, 0.0)
    B, C1, L = h1.shape
    pooled = jnp.max(h1.reshape(B, C1, L // 2, 2), axis=-1)
    h2 = jax.lax.conv_general_dilated(
        pooled, w2, window_strides=(1,),
        padding=[((K2 - 1) // 2, (K2 - 1) - (K2 - 1) // 2)],
        dimension_numbers=dn) + b2[None, :, None]
    h2 = jnp.maximum(h2, 0.0)
    g = jnp.max(h2, axis=-1)                      # (B, 64)
    logit = g @ wfc.T + bfc[None, :]              # (B, 1)
    return jax.nn.sigmoid(logit)[:, 0]


if __name__ == "__main__":
    key = jax.random.PRNGKey(0)
    keys = jax.random.split(key, 7)

    def uniform_init(k, shape, fan_in):
        bound = 1.0 / (fan_in ** 0.5)
        return jax.random.uniform(k, shape, jnp.float32, -bound, bound)

    # Deterministic parameters matching the nn.Module shapes.
    w1 = uniform_init(keys[1], (32, 4, 8), 4 * 8)     # Conv1d(4, 32, 8)
    b1 = uniform_init(keys[2], (32,), 4 * 8)
    w2 = uniform_init(keys[3], (64, 32, 6), 32 * 6)   # Conv1d(32, 64, 6)
    b2 = uniform_init(keys[4], (64,), 32 * 6)
    wfc = uniform_init(keys[5], (1, 64), 64)          # Linear(64, 1)
    bfc = uniform_init(keys[6], (1,), 64)
    params = (w1, b1, w2, b2, wfc, bfc)

    # Small input: batch=2, channels=4, seq_len=16.
    x = jax.random.normal(keys[0], (2, 4, 16), jnp.float32)

    forward = make_polynet_forward(params)
    out = jax.block_until_ready(forward(x))
    ref = jax.block_until_ready(polynet_reference(x, params))

    assert out.shape == (2,), out.shape
    # bf16 MXU operands with f32 accumulation (explicit precision decision per the
    # perf review); 2e-3 comfortably bounds the bf16 rounding error of this net.
    assert jnp.allclose(out, ref, rtol=2e-3, atol=2e-3), (out, ref)

    print("KERNEL_OK")
</pallas_src>

<mosaic_0001>
module attributes {stable_mosaic.version = 11 : i64} {
  func.func @polynet_kernel(%arg0: i32, %arg1: memref<1x8x2944xf32, #tpu.memory_space<vmem>>, %arg2: memref<32x64xbf16, #tpu.memory_space<vmem>>, %arg3: memref<32x1xf32, #tpu.memory_space<vmem>>, %arg4: memref<64x192xbf16, #tpu.memory_space<vmem>>, %arg5: memref<64x1xf32, #tpu.memory_space<vmem>>, %arg6: memref<1x64xbf16, #tpu.memory_space<vmem>>, %arg7: memref<1x1xf32, #tpu.memory_space<vmem>>, %arg8: memref<1x128xf32, #tpu.memory_space<vmem>>, %arg9: memref<32x1664xbf16, #tpu.memory_space<vmem>>) attributes {dimension_semantics = [#tpu.dimension_semantics<parallel>], iteration_bounds = array<i64: 1>, scalar_prefetch = 0 : i64, scratch_operands = 1 : i64, tpu.core_type = #tpu.core_type<tc>, window_params = [{transform_indices = @transform_0, window_bounds = array<i64: 1, 8, 2944>}, {pipeline_mode = #tpu.pipeline_mode<synchronous>, transform_indices = @transform_1, window_bounds = array<i64: 32, 64>}, {pipeline_mode = #tpu.pipeline_mode<synchronous>, transform_indices = @transform_2, window_bounds = array<i64: 32, 1>}, {pipeline_mode = #tpu.pipeline_mode<synchronous>, transform_indices = @transform_3, window_bounds = array<i64: 64, 192>}, {pipeline_mode = #tpu.pipeline_mode<synchronous>, transform_indices = @transform_4, window_bounds = array<i64: 64, 1>}, {pipeline_mode = #tpu.pipeline_mode<synchronous>, transform_indices = @transform_5, window_bounds = array<i64: 1, 64>}, {pipeline_mode = #tpu.pipeline_mode<synchronous>, transform_indices = @transform_6, window_bounds = array<i64: 1, 1>}, {transform_indices = @transform_7, window_bounds = array<i64: 1, 128>}]} {
    %c0 = arith.constant 0 : index
    %c0_0 = arith.constant 0 : index
    %c0_1 = arith.constant 0 : index
    %0 = vector.load %arg1[%c0, %c0_0, %c0_1] : memref<1x8x2944xf32, #tpu.memory_space<vmem>>, vector<1x8x2944xf32>
    %1 = vector.shape_cast %0 : vector<1x8x2944xf32> to vector<8x2944xf32>
    %2 = vector.extract_strided_slice %1 {offsets = [0, 0], sizes = [8, 2048], strides = [1, 1]} : vector<8x2944xf32> to vector<8x2048xf32>
    %3 = vector.extract_strided_slice %1 {offsets = [0, 128], sizes = [8, 2048], strides = [1, 1]} : vector<8x2944xf32> to vector<8x2048xf32>
    %4 = vector.extract_strided_slice %1 {offsets = [0, 256], sizes = [8, 2048], strides = [1, 1]} : vector<8x2944xf32> to vector<8x2048xf32>
    %5 = vector.extract_strided_slice %1 {offsets = [0, 384], sizes = [8, 2048], strides = [1, 1]} : vector<8x2944xf32> to vector<8x2048xf32>
    %6 = vector.extract_strided_slice %1 {offsets = [0, 512], sizes = [8, 2048], strides = [1, 1]} : vector<8x2944xf32> to vector<8x2048xf32>
    %7 = vector.extract_strided_slice %1 {offsets = [0, 640], sizes = [8, 2048], strides = [1, 1]} : vector<8x2944xf32> to vector<8x2048xf32>
    %8 = vector.extract_strided_slice %1 {offsets = [0, 768], sizes = [8, 2048], strides = [1, 1]} : vector<8x2944xf32> to vector<8x2048xf32>
    %9 = vector.extract_strided_slice %1 {offsets = [0, 896], sizes = [8, 2048], strides = [1, 1]} : vector<8x2944xf32> to vector<8x2048xf32>
    %10 = tpu.concatenate %2, %3, %4, %5, %6, %7, %8, %9 in 0 : vector<8x2048xf32>, vector<8x2048xf32>, vector<8x2048xf32>, vector<8x2048xf32>, vector<8x2048xf32>, vector<8x2048xf32>, vector<8x2048xf32>, vector<8x2048xf32> -> vector<64x2048xf32>
    %c0_2 = arith.constant 0 : index
    %c0_3 = arith.constant 0 : index
    %11 = vector.load %arg2[%c0_2, %c0_3] : memref<32x64xbf16, #tpu.memory_space<vmem>>, vector<32x64xbf16>
    %12 = arith.truncf %10 : vector<64x2048xf32> to vector<64x2048xbf16>
    %cst = arith.constant dense<0.000000e+00> : vector<32x2048xf32>
    %13 = tpu.matmul %11, %12, %cst {dimension_numbers = #tpu.dot_dimension_numbers<[1], [0], [0], [1], [0, 0, 1, 1], [], []>} : vector<32x64xbf16>, vector<64x2048xbf16>, vector<32x2048xf32> -> vector<32x2048xf32>
    %c0_4 = arith.constant 0 : index
    %c0_5 = arith.constant 0 : index
    %14 = vector.load %arg3[%c0_4, %c0_5] : memref<32x1xf32, #tpu.memory_space<vmem>>, vector<32x1xf32>
    %15 = vector.broadcast %14 : vector<32x1xf32> to vector<32x2048xf32>
    %16 = arith.addf %13, %15 : vector<32x2048xf32>
    %cst_6 = arith.constant 0.000000e+00 : f32
    %17 = vector.broadcast %cst_6 : f32 to vector<32x2048xf32>
    %18 = arith.maximumf %16, %17 : vector<32x2048xf32>
    %cst_7 = arith.constant 0.000000e+00 : bf16
    %19 = vector.broadcast %cst_7 : bf16 to vector<32x1664xbf16>
    %c0_8 = arith.constant 0 : index
    %c0_9 = arith.constant 0 : index
    %20 = vector.load %arg9[%c0_8, %c0_9] : memref<32x1664xbf16, #tpu.memory_space<vmem>>, vector<32x1664xbf16>
    tpu.vector_store %arg9[%c0_8, %c0_9], %19 {strides = array<i32>} : memref<32x1664xbf16, #tpu.memory_space<vmem>>, vector<32x1664xbf16>,
    %21 = vector.extract_strided_slice %18 {offsets = [0, 0], sizes = [32, 128], strides = [1, 1]} : vector<32x2048xf32> to vector<32x128xf32>
    %22 = vector.extract_strided_slice %18 {offsets = [0, 128], sizes = [32, 128], strides = [1, 1]} : vector<32x2048xf32> to vector<32x128xf32>
    %23 = arith.maximumf %21, %22 : vector<32x128xf32>
    %24 = arith.truncf %23 : vector<32x128xf32> to vector<32x128xbf16>
    %c0_10 = arith.constant 0 : index
    %c256 = arith.constant 256 : index
    %25 = vector.load %arg9[%c0_10, %c256] : memref<32x1664xbf16, #tpu.memory_space<vmem>>, vector<32x128xbf16>
    tpu.vector_store %arg9[%c0_10, %c256], %24 {strides = array<i32>} : memref<32x1664xbf16, #tpu.memory_space<vmem>>, vector<32x128xbf16>,
    %26 = vector.extract_strided_slice %18 {offsets = [0, 256], sizes = [32, 128], strides = [1, 1]} : vector<32x2048xf32> to vector<32x128xf32>
    %27 = vector.extract_strided_slice %18 {offsets = [0, 384], sizes = [32, 128], strides = [1, 1]} : vector<32x2048xf32> to vector<32x128xf32>
    %28 = arith.maximumf %26, %27 : vector<32x128xf32>
    %29 = arith.truncf %28 : vector<32x128xf32> to vector<32x128xbf16>
    %c0_11 = arith.constant 0 : index
    %c384 = arith.constant 384 : index
    %30 = vector.load %arg9[%c0_11, %c384] : memref<32x1664xbf16, #tpu.memory_space<vmem>>, vector<32x128xbf16>
    tpu.vector_store %arg9[%c0_11, %c384], %29 {strides = array<i32>} : memref<32x1664xbf16, #tpu.memory_space<vmem>>, vector<32x128xbf16>,
    %31 = vector.extract_strided_slice %18 {offsets = [0, 512], sizes = [32, 128], strides = [1, 1]} : vector<32x2048xf32> to vector<32x128xf32>
    %32 = vector.extract_strided_slice %18 {offsets = [0, 640], sizes = [32, 128], strides = [1, 1]} : vector<32x2048xf32> to vector<32x128xf32>
    %33 = arith.maximumf %31, %32 : vector<32x128xf32>
    %34 = arith.truncf %33 : vector<32x128xf32> to vector<32x128xbf16>
    %c0_12 = arith.constant 0 : index
    %c512 = arith.constant 512 : index
    %35 = vector.load %arg9[%c0_12, %c512] : memref<32x1664xbf16, #tpu.memory_space<vmem>>, vector<32x128xbf16>
    tpu.vector_store %arg9[%c0_12, %c512], %34 {strides = array<i32>} : memref<32x1664xbf16, #tpu.memory_space<vmem>>, vector<32x128xbf16>,
    %36 = vector.extract_strided_slice %18 {offsets = [0, 768], sizes = [32, 128], strides = [1, 1]} : vector<32x2048xf32> to vector<32x128xf32>
    %37 = vector.extract_strided_slice %18 {offsets = [0, 896], sizes = [32, 128], strides = [1, 1]} : vector<32x2048xf32> to vector<32x128xf32>
    %38 = arith.maximumf %36, %37 : vector<32x128xf32>
    %39 = arith.truncf %38 : vector<32x128xf32> to vector<32x128xbf16>
    %c0_13 = arith.constant 0 : index
    %c640 = arith.constant 640 : index
    %40 = vector.load %arg9[%c0_13, %c640] : memref<32x1664xbf16, #tpu.memory_space<vmem>>, vector<32x128xbf16>
    tpu.vector_store %arg9[%c0_13, %c640], %39 {strides = array<i32>} : memref<32x1664xbf16, #tpu.memory_space<vmem>>, vector<32x128xbf16>,
    %41 = vector.extract_strided_slice %18 {offsets = [0, 1024], sizes = [32, 128], strides = [1, 1]} : vector<32x2048xf32> to vector<32x128xf32>
    %42 = vector.extract_strided_slice %18 {offsets = [0, 1152], sizes = [32, 128], strides = [1, 1]} : vector<32x2048xf32> to vector<32x128xf32>
    %43 = arith.maximumf %41, %42 : vector<32x128xf32>
    %44 = arith.truncf %43 : vector<32x128xf32> to vector<32x128xbf16>
    %c0_14 = arith.constant 0 : index
    %c768 = arith.constant 768 : index
    %45 = vector.load %arg9[%c0_14, %c768] : memref<32x1664xbf16, #tpu.memory_space<vmem>>, vector<32x128xbf16>
    tpu.vector_store %arg9[%c0_14, %c768], %44 {strides = array<i32>} : memref<32x1664xbf16, #tpu.memory_space<vmem>>, vector<32x128xbf16>,
    %46 = vector.extract_strided_slice %18 {offsets = [0, 1280], sizes = [32, 128], strides = [1, 1]} : vector<32x2048xf32> to vector<32x128xf32>
    %47 = vector.extract_strided_slice %18 {offsets = [0, 1408], sizes = [32, 128], strides = [1, 1]} : vector<32x2048xf32> to vector<32x128xf32>
    %48 = arith.maximumf %46, %47 : vector<32x128xf32>
    %49 = arith.truncf %48 : vector<32x128xf32> to vector<32x128xbf16>
    %c0_15 = arith.constant 0 : index
    %c896 = arith.constant 896 : index
    %50 = vector.load %arg9[%c0_15, %c896] : memref<32x1664xbf16, #tpu.memory_space<vmem>>, vector<32x128xbf16>
    tpu.vector_store %arg9[%c0_15, %c896], %49 {strides = array<i32>} : memref<32x1664xbf16, #tpu.memory_space<vmem>>, vector<32x128xbf16>,
    %51 = vector.extract_strided_slice %18 {offsets = [0, 1536], sizes = [32, 128], strides = [1, 1]} : vector<32x2048xf32> to vector<32x128xf32>
    %52 = vector.extract_strided_slice %18 {offsets = [0, 1664], sizes = [32, 128], strides = [1, 1]} : vector<32x2048xf32> to vector<32x128xf32>
    %53 = arith.maximumf %51, %52 : vector<32x128xf32>
    %54 = arith.truncf %53 : vector<32x128xf32> to vector<32x128xbf16>
    %c0_16 = arith.constant 0 : index
    %c1024 = arith.constant 1024 : index
    %55 = vector.load %arg9[%c0_16, %c1024] : memref<32x1664xbf16, #tpu.memory_space<vmem>>, vector<32x128xbf16>
    tpu.vector_store %arg9[%c0_16, %c1024], %54 {strides = array<i32>} : memref<32x1664xbf16, #tpu.memory_space<vmem>>, vector<32x128xbf16>,
    %56 = vector.extract_strided_slice %18 {offsets = [0, 1792], sizes = [32, 128], strides = [1, 1]} : vector<32x2048xf32> to vector<32x128xf32>
    %57 = vector.extract_strided_slice %18 {offsets = [0, 1920], sizes = [32, 128], strides = [1, 1]} : vector<32x2048xf32> to vector<32x128xf32>
    %58 = arith.maximumf %56, %57 : vector<32x128xf32>
    %59 = arith.truncf %58 : vector<32x128xf32> to vector<32x128xbf16>
    %c0_17 = arith.constant 0 : index
    %c1152 = arith.constant 1152 : index
    %60 = vector.load %arg9[%c0_17, %c1152] : memref<32x1664xbf16, #tpu.memory_space<vmem>>, vector<32x128xbf16>
    tpu.vector_store %arg9[%c0_17, %c1152], %59 {strides = array<i32>} : memref<32x1664xbf16, #tpu.memory_space<vmem>>, vector<32x128xbf16>,
    %c0_18 = arith.constant 0 : index
    %c0_19 = arith.constant 0 : index
    %61 = vector.load %arg9[%c0_18, %c0_19] : memref<32x1664xbf16, #tpu.memory_space<vmem>>, vector<32x1024xbf16>
    %c0_20 = arith.constant 0 : index
    %c128 = arith.constant 128 : index
    %62 = vector.load %arg9[%c0_20, %c128] : memref<32x1664xbf16, #tpu.memory_space<vmem>>, vector<32x1024xbf16>
    %c0_21 = arith.constant 0 : index
    %c256_22 = arith.constant 256 : index
    %63 = vector.load %arg9[%c0_21, %c256_22] : memref<32x1664xbf16, #tpu.memory_space<vmem>>, vector<32x1024xbf16>
    %c0_23 = arith.constant 0 : index
    %c384_24 = arith.constant 384 : index
    %64 = vector.load %arg9[%c0_23, %c384_24] : memref<32x1664xbf16, #tpu.memory_space<vmem>>, vector<32x1024xbf16>
    %c0_25 = arith.constant 0 : index
    %c512_26 = arith.constant 512 : index
    %65 = vector.load %arg9[%c0_25, %c512_26] : memref<32x1664xbf16, #tpu.memory_space<vmem>>, vector<32x1024xbf16>
    %c0_27 = arith.constant 0 : index
    %c640_28 = arith.constant 640 : index
    %66 = vector.load %arg9[%c0_27, %c640_28] : memref<32x1664xbf16, #tpu.memory_space<vmem>>, vector<32x1024xbf16>
    %67 = tpu.concatenate %61, %62, %63, %64, %65, %66 in 0 : vector<32x1024xbf16>, vector<32x1024xbf16>, vector<32x1024xbf16>, vector<32x1024xbf16>, vector<32x1024xbf16>, vector<32x1024xbf16> -> vector<192x1024xbf16>
    %c0_29 = arith.constant 0 : index
    %c0_30 = arith.constant 0 : index
    %68 = vector.load %arg4[%c0_29, %c0_30] : memref<64x192xbf16, #tpu.memory_space<vmem>>, vector<64x192xbf16>
    %cst_31 = arith.constant dense<0.000000e+00> : vector<64x1024xf32>
    %69 = tpu.matmul %68, %67, %cst_31 {dimension_numbers = #tpu.dot_dimension_numbers<[1], [0], [0], [1], [0, 0, 1, 1], [], []>} : vector<64x192xbf16>, vector<192x1024xbf16>, vector<64x1024xf32> -> vector<64x1024xf32>
    %c0_32 = arith.constant 0 : index
    %c0_33 = arith.constant 0 : index
    %70 = vector.load %arg5[%c0_32, %c0_33] : memref<64x1xf32, #tpu.memory_space<vmem>>, vector<64x1xf32>
    %71 = vector.broadcast %70 : vector<64x1xf32> to vector<64x1024xf32>
    %72 = arith.addf %69, %71 : vector<64x1024xf32>
    %cst_34 = arith.constant 0.000000e+00 : f32
    %73 = vector.broadcast %cst_34 : f32 to vector<64x1024xf32>
    %74 = arith.maximumf %72, %73 : vector<64x1024xf32>
    %75 = vector.extract_strided_slice %74 {offsets = [0, 0], sizes = [64, 512], strides = [1, 1]} : vector<64x1024xf32> to vector<64x512xf32>
    %76 = vector.extract_strided_slice %74 {offsets = [0, 512], sizes = [64, 512], strides = [1, 1]} : vector<64x1024xf32> to vector<64x512xf32>
    %77 = arith.maximumf %75, %76 : vector<64x512xf32>
    %78 = vector.extract_strided_slice %77 {offsets = [0, 0], sizes = [64, 256], strides = [1, 1]} : vector<64x512xf32> to vector<64x256xf32>
    %79 = vector.extract_strided_slice %77 {offsets = [0, 256], sizes = [64, 256], strides = [1, 1]} : vector<64x512xf32> to vector<64x256xf32>
    %80 = arith.maximumf %78, %79 : vector<64x256xf32>
    %81 = vector.extract_strided_slice %80 {offsets = [0, 0], sizes = [64, 128], strides = [1, 1]} : vector<64x256xf32> to vector<64x128xf32>
    %82 = vector.extract_strided_slice %80 {offsets = [0, 128], sizes = [64, 128], strides = [1, 1]} : vector<64x256xf32> to vector<64x128xf32>
    %83 = arith.maximumf %81, %82 : vector<64x128xf32>
    %c0_35 = arith.constant 0 : index
    %c0_36 = arith.constant 0 : index
    %84 = vector.load %arg6[%c0_35, %c0_36] : memref<1x64xbf16, #tpu.memory_space<vmem>>, vector<1x64xbf16>
    %85 = arith.truncf %83 : vector<64x128xf32> to vector<64x128xbf16>
    %cst_37 = arith.constant dense<0.000000e+00> : vector<1x128xf32>
    %86 = tpu.matmul %84, %85, %cst_37 {dimension_numbers = #tpu.dot_dimension_numbers<[1], [0], [0], [1], [0, 0, 1, 1], [], []>} : vector<1x64xbf16>, vector<64x128xbf16>, vector<1x128xf32> -> vector<1x128xf32>
    %c0_38 = arith.constant 0 : index
    %c0_39 = arith.constant 0 : index
    %87 = vector.load %arg7[%c0_38, %c0_39] : memref<1x1xf32, #tpu.memory_space<vmem>>, vector<1x1xf32>
    %88 = vector.broadcast %87 : vector<1x1xf32> to vector<1x128xf32>
    %89 = arith.addf %86, %88 : vector<1x128xf32>
    %cst_40 = arith.constant 0.000000e+00 : f32
    %90 = vector.broadcast %cst_40 : f32 to vector<1x128xf32>
    %91 = arith.subf %90, %89 : vector<1x128xf32>
    %92 = math.exp %91 : vector<1x128xf32>
    %cst_41 = arith.constant 1.000000e+00 : f32
    %93 = vector.broadcast %cst_41 : f32 to vector<1x128xf32>
    %94 = arith.addf %93, %92 : vector<1x128xf32>
    %cst_42 = arith.constant 1.000000e+00 : f32
    %95 = vector.broadcast %cst_42 : f32 to vector<1x128xf32>
    %96 = arith.divf %95, %94 : vector<1x128xf32>
    %c0_43 = arith.constant 0 : index
    %c0_44 = arith.constant 0 : index
    %97 = vector.load %arg8[%c0_43, %c0_44] : memref<1x128xf32, #tpu.memory_space<vmem>>, vector<1x128xf32>
    tpu.vector_store %arg8[%c0_43, %c0_44], %96 {strides = array<i32>} : memref<1x128xf32, #tpu.memory_space<vmem>>, vector<1x128xf32>,
    return
  }
  func.func @transform_0(%arg0: i32) -> (i32, i32, i32) {
    %c0_i32 = arith.constant 0 : i32
    %c0_i32_0 = arith.constant 0 : i32
    %c0_i32_1 = arith.constant 0 : i32
    return %arg0, %c0_i32, %c0_i32_0 : i32, i32, i32
  }
  func.func @transform_1(%arg0: i32) -> (i32, i32) {
    %c0_i32 = arith.constant 0 : i32
    %c0_i32_0 = arith.constant 0 : i32
    %c0_i32_1 = arith.constant 0 : i32
    return %c0_i32, %c0_i32_0 : i32, i32
  }
  func.func @transform_2(%arg0: i32) -> (i32, i32) {
    %c0_i32 = arith.constant 0 : i32
    %c0_i32_0 = arith.constant 0 : i32
    %c0_i32_1 = arith.constant 0 : i32
    return %c0_i32, %c0_i32_0 : i32, i32
  }
  func.func @transform_3(%arg0: i32) -> (i32, i32) {
    %c0_i32 = arith.constant 0 : i32
    %c0_i32_0 = arith.constant 0 : i32
    %c0_i32_1 = arith.constant 0 : i32
    return %c0_i32, %c0_i32_0 : i32, i32
  }
  func.func @transform_4(%arg0: i32) -> (i32, i32) {
    %c0_i32 = arith.constant 0 : i32
    %c0_i32_0 = arith.constant 0 : i32
    %c0_i32_1 = arith.constant 0 : i32
    return %c0_i32, %c0_i32_0 : i32, i32
  }
  func.func @transform_5(%arg0: i32) -> (i32, i32) {
    %c0_i32 = arith.constant 0 : i32
    %c0_i32_0 = arith.constant 0 : i32
    %c0_i32_1 = arith.constant 0 : i32
    return %c0_i32, %c0_i32_0 : i32, i32
  }
  func.func @transform_6(%arg0: i32) -> (i32, i32) {
    %c0_i32 = arith.constant 0 : i32
    %c0_i32_0 = arith.constant 0 : i32
    %c0_i32_1 = arith.constant 0 : i32
    return %c0_i32, %c0_i32_0 : i32, i32
  }
  func.func @transform_7(%arg0: i32) -> (i32, i32) {
    %c0_i32 = arith.constant 0 : i32
    %c0_i32_0 = arith.constant 0 : i32
    return %c0_i32, %arg0 : i32, i32
  }
}

</mosaic_0001>

<llo_original>
// kernel: forward.1
$region0: #{forward.1}
  #allocation0 [shape = 'u32[]', space=smem, size = 0x4, offset = 0x4, fixed_abs, tag = 'smem constant byte address 0x4 - core index']
  #allocation1 [shape = 'u32[144,128]{1,0:T(1,128)}', space=vmem, size = 0x12000, scoped, tag = 'internal scratch']
  #allocation2 [shape = 'bf16[32,1664]{1,0:T(16,128)(2,1)}', space=vmem, size = 0x1a000, scoped, tag = 'scratch operand']
  #allocation3 [shape = 'f32[1,1]{1,0:T(1,128)S(1)}', space=vmem, size = 0x200, scoped, tag = 'scoped memory for forward.1']
  %s0 = inlined_call_operand.vmem [shape: f32[1,8,2944], index: 0, kind: input, shape index: {}]
  %s1 = inlined_call_operand.vmem [shape: bf16[32,64], index: 1, kind: input, shape index: {}]
  %s2 = inlined_call_operand.vmem [shape: f32[32,1], index: 2, kind: input, shape index: {}]
  %s3 = inlined_call_operand.vmem [shape: bf16[64,192], index: 3, kind: input, shape index: {}]
  %s4 = inlined_call_operand.vmem [shape: f32[64,1], index: 4, kind: input, shape index: {}]
  %s5 = inlined_call_operand.vmem [shape: bf16[1,64], index: 5, kind: input, shape index: {}]
  %s6 = inlined_call_operand.<no memory space> [shape: f32[1,1], index: 6, kind: input, shape index: {}]
  %s7 = inlined_call_operand.vmem [shape: f32[1,128], index: 7, kind: output, shape index: {}]
  %s8 = sld [smem:[#allocation0]]
  $region38: #{forward.1} parent=0
    _
  %s10 = ssub.s32 1, %s8
  %s11 = scalar_select 0, %s10, %s8
  %v12 = vstv %s6
  %13 = vst [vmem:[#allocation3] sm:$0x1] %v12
  // Predicated region
  $region2: #{forward.1} parent=0 // pred_check
    _
  $region3: #{forward.1} parent=0 // pred_check_branch
    %15 = sbr.rel (0) target = $region5
  $region4: #{forward.1} parent=0 // pred_region
    _
  $region5: #{forward.1} parent=0 // pred_fallthru
    _
  // Predicated region
  $region6: #{forward.1} parent=0 // pred_check
    _
  $region7: #{forward.1} parent=0 // pred_check_branch
    %17 = sbr.rel (0) target = $region9
  $region8: #{forward.1} parent=0 // pred_region
    _
  $region9: #{forward.1} parent=0 // pred_fallthru
    _
  // Predicated region
  $region10: #{forward.1} parent=0 // pred_check
    _
  $region11: #{forward.1} parent=0 // pred_check_branch
    %19 = sbr.rel (0) target = $region13
  $region12: #{forward.1} parent=0 // pred_region
    _
  $region13: #{forward.1} parent=0 // pred_fallthru
    _
  // Predicated region
  $region14: #{forward.1} parent=0 // pred_check
    _
  $region15: #{forward.1} parent=0 // pred_check_branch
    %21 = sbr.rel (0) target = $region17
  $region16: #{forward.1} parent=0 // pred_region
    _
  $region17: #{forward.1} parent=0 // pred_fallthru
    _
  // Predicated region
  $region18: #{forward.1} parent=0 // pred_check
    _
  $region19: #{forward.1} parent=0 // pred_check_branch
    %23 = sbr.rel (0) target = $region21
  $region20: #{forward.1} parent=0 // pred_region
    _
  $region21: #{forward.1} parent=0 // pred_fallthru
    _
  // Predicated region
  $region22: #{forward.1} parent=0 // pred_check
    _
  $region23: #{forward.1} parent=0 // pred_check_branch
    %25 = sbr.rel (0) target = $region25
  $region24: #{forward.1} parent=0 // pred_region
    _
  $region25: #{forward.1} parent=0 // pred_fallthru
    _
  // Predicated region
  $region26: #{forward.1} parent=0 // pred_check
    _
  $region27: #{forward.1} parent=0 // pred_check_branch
    %27 = sbr.rel (0) target = $region29
  $region28: #{forward.1} parent=0 // pred_region
    _
  $region29: #{forward.1} parent=0 // pred_fallthru
    _
  %v29 = vld [vmem:[%s0] sm:$0xff]
  %v30 = vld [vmem:[%s0 + $0x8] sm:$0xff]
  %v31 = vld [vmem:[%s0 + $0x10] sm:$0xff]
  %v32 = vld [vmem:[%s0 + $0x18] sm:$0xff]
  %v33 = vld [vmem:[%s0 + $0x20] sm:$0xff]
  %v34 = vld [vmem:[%s0 + $0x28] sm:$0xff]
  %v35 = vld [vmem:[%s0 + $0x30] sm:$0xff]
  %v36 = vld [vmem:[%s0 + $0x38] sm:$0xff]
  %v37 = vld [vmem:[%s0 + $0x40] sm:$0xff]
  %v38 = vld [vmem:[%s0 + $0x48] sm:$0xff]
  %v39 = vld [vmem:[%s0 + $0x50] sm:$0xff]
  %v40 = vld [vmem:[%s0 + $0x58] sm:$0xff]
  %v41 = vld [vmem:[%s0 + $0x60] sm:$0xff]
  %v42 = vld [vmem:[%s0 + $0x68] sm:$0xff]
  %v43 = vld [vmem:[%s0 + $0x70] sm:$0xff]
  %v44 = vld [vmem:[%s0 + $0x78] sm:$0xff]
  %v45 = vld [vmem:[%s0 + $0x80] sm:$0xff]
  %v46 = vld [vmem:[%s0 + $0x88] sm:$0xff]
  %v47 = vld [vmem:[%s0 + $0x90] sm:$0xff]
  %v48 = vld [vmem:[%s0 + $0x98] sm:$0xff]
  %v49 = vld [vmem:[%s0 + $0xa0] sm:$0xff]
  %v50 = vld [vmem:[%s0 + $0xa8] sm:$0xff]
  %v51 = vld [vmem:[%s0 + $0xb0] sm:$0xff]
  %v52 = vld [vmem:[%s1] sm:$0xf]
  %v53 = vld [vmem:[%s1 + $0x4] sm:$0xf]
  %v54 = vld [vmem:[%s1 + $0x8] sm:$0xf]
  %v55 = vld [vmem:[%s1 + $0xc] sm:$0xf]
  %v56 = vpack.c.bf16 %v30, %v29
  %v57 = vpack.c.bf16 %v31, %v30
  %v58 = vpack.c.bf16 %v32, %v31
  %v59 = vpack.c.bf16 %v33, %v32
  %v60 = vpack.c.bf16 %v34, %v33
  %v61 = vpack.c.bf16 %v35, %v34
  %v62 = vpack.c.bf16 %v36, %v35
  %v63 = vpack.c.bf16 %v37, %v36
  %v64 = vpack.c.bf16 %v38, %v37
  %v65 = vpack.c.bf16 %v39, %v38
  %v66 = vpack.c.bf16 %v40, %v39
  %v67 = vpack.c.bf16 %v41, %v40
  %v68 = vpack.c.bf16 %v42, %v41
  %v69 = vpack.c.bf16 %v43, %v42
  %v70 = vpack.c.bf16 %v44, %v43
  %v71 = vpack.c.bf16 %v45, %v44
  %v72 = vpack.c.bf16 %v46, %v45
  %v73 = vpack.c.bf16 %v47, %v46
  %v74 = vpack.c.bf16 %v48, %v47
  %v75 = vpack.c.bf16 %v49, %v48
  %v76 = vpack.c.bf16 %v50, %v49
  %v77 = vpack.c.bf16 %v51, %v50
  %v78 = vld [vmem:[%s2] sm:$0xff]
  %v79 = vld [vmem:[%s2 + $0x8] sm:$0xff]
  %v80 = vld [vmem:[%s2 + $0x10] sm:$0xff]
  %v81 = vld [vmem:[%s2 + $0x18] sm:$0xff]
  %83 = vset.pattern.permute.xlu0 0
  %84 = vperm.xlu0 %83, %v78
  %v85 = vpop.permute.xlu0 %84
  %88 = vset.pattern.permute.xlu0 0
  %89 = vperm.xlu0 %88, %v79
  %v90 = vpop.permute.xlu0 %89
  %93 = vset.pattern.permute.xlu0 0
  %94 = vperm.xlu0 %93, %v80
  %v95 = vpop.permute.xlu0 %94
  %98 = vset.pattern.permute.xlu0 0
  %99 = vperm.xlu0 %98, %v81
  %v100 = vpop.permute.xlu0 %99
  %v106 = vunpack.c.l.b16 %v52
  %v107 = vunpack.c.l.b16 %v53
  %v108 = vunpack.c.l.b16 %v54
  %v109 = vunpack.c.l.b16 %v55
  %v110 = vpack.c.b16 %v107, %v106
  %v111 = vpack.c.b16 %v109, %v108
  %vm112 = vcmask 523264
  %v114 = vsel %vm112, %v110, 0
  %v117 = vsel %vm112, %v111, 0
  %119 = vmatprep.subr.bf16.mxu0 %v57
  %120 = vmatpush1.bf16.msra.mxu0 %v56
  %121 = vmatprep.subr.bf16.mxu0 %v59
  %122 = vmatpush1.bf16.msra.mxu0 %v58
  %123 = vmatprep.subr.bf16.mxu0 %v61
  %124 = vmatpush1.bf16.msra.mxu0 %v60
  %125 = vmatprep.subr.bf16.mxu0 %v63
  %126 = vmatpush1.bf16.msra.mxu0 %v62
  %127 = vmatprep.subr.bf16.mxu0 0
  %128 = vmatpush1.bf16.msra.mxu0 0
  %129 = vmatprep.subr.bf16.mxu0 0
  %130 = vmatpush1.bf16.msra.mxu0 0
  %131 = vmatprep.subr.bf16.mxu0 0
  %132 = vmatpush1.bf16.msra.mxu0 0
  %133 = vmatprep.subr.bf16.mxu0 0
  %134 = vmatpush1.bf16.msra.mxu0 0
  %135 = vmatprep.subr.bf16.mxu0 0
  %136 = vmatpush1.bf16.msra.mxu0 0
  %137 = vmatprep.subr.bf16.mxu0 0
  %138 = vmatpush1.bf16.msra.mxu0 0
  %139 = vmatprep.subr.bf16.mxu0 0
  %140 = vmatpush1.bf16.msra.mxu0 0
  %141 = vmatprep.subr.bf16.mxu0 0
  %142 = vmatpush1.bf16.msra.mxu0 0
  %143 = vmatprep.subr.bf16.mxu0 0
  %144 = vmatpush1.bf16.msra.mxu0 0
  %145 = vmatprep.subr.bf16.mxu0 0
  %146 = vmatpush1.bf16.msra.mxu0 0
  %147 = vmatprep.subr.bf16.mxu0 0
  %148 = vmatpush1.bf16.msra.mxu0 0
  %149 = vmatprep.subr.bf16.mxu0 0
  %150 = vmatpush1.bf16.msra.mxu0 0
  %151 = vmatprep.mubr.bf16.mxu0 0
  %152 = vmatmul.mubr.bf16.gmra.mrb[0].mxu0 %v114
  %v153 = vpop.f32.mrb[0].mxu0
  %v154 = vadd.f32 %v85, %v153
  %v155 = vpop.f32.mrb[0].mxu0
  %v156 = vadd.f32 %v85, %v155
  %v157 = vpop.f32.mrb[0].mxu0
  %v158 = vadd.f32 %v90, %v157
  %v159 = vpop.f32.mrb[0].mxu0
  %v160 = vadd.f32 %v90, %v159
  %161 = vmatprep.mubr.bf16.mxu0 0
  %162 = vmatmul.mubr.bf16.gmra.mrb[0].mxu0 %v117
  %v163 = vpop.f32.mrb[0].mxu0
  %v164 = vadd.f32 %v95, %v163
  %v165 = vpop.f32.mrb[0].mxu0
  %v166 = vadd.f32 %v95, %v165
  %v167 = vpop.f32.mrb[0].mxu0
  %v168 = vadd.f32 %v100, %v167
  %v169 = vpop.f32.mrb[0].mxu0
  %v170 = vadd.f32 %v100, %v169
  %171 = vdwg.mxu0
  %172 = vmatprep.subr.bf16.mxu0 %v59
  %173 = vmatpush1.bf16.msra.mxu0 %v58
  %174 = vmatprep.subr.bf16.mxu0 %v61
  %175 = vmatpush1.bf16.msra.mxu0 %v60
  %176 = vmatprep.subr.bf16.mxu0 %v63
  %177 = vmatpush1.bf16.msra.mxu0 %v62
  %178 = vmatprep.subr.bf16.mxu0 %v65
  %179 = vmatpush1.bf16.msra.mxu0 %v64
  %180 = vmatprep.subr.bf16.mxu0 0
  %181 = vmatpush1.bf16.msra.mxu0 0
  %182 = vmatprep.subr.bf16.mxu0 0
  %183 = vmatpush1.bf16.msra.mxu0 0
  %184 = vmatprep.subr.bf16.mxu0 0
  %185 = vmatpush1.bf16.msra.mxu0 0
  %186 = vmatprep.subr.bf16.mxu0 0
  %187 = vmatpush1.bf16.msra.mxu0 0
  %188 = vmatprep.subr.bf16.mxu0 0
  %189 = vmatpush1.bf16.msra.mxu0 0
  %190 = vmatprep.subr.bf16.mxu0 0
  %191 = vmatpush1.bf16.msra.mxu0 0
  %192 = vmatprep.subr.bf16.mxu0 0
  %193 = vmatpush1.bf16.msra.mxu0 0
  %194 = vmatprep.subr.bf16.mxu0 0
  %195 = vmatpush1.bf16.msra.mxu0 0
  %196 = vmatprep.subr.bf16.mxu0 0
  %197 = vmatpush1.bf16.msra.mxu0 0
  %198 = vmatprep.subr.bf16.mxu0 0
  %199 = vmatpush1.bf16.msra.mxu0 0
  %200 = vmatprep.subr.bf16.mxu0 0
  %201 = vmatpush1.bf16.msra.mxu0 0
  %202 = vmatprep.subr.bf16.mxu0 0
  %203 = vmatpush1.bf16.msra.mxu0 0
  %204 = vmatprep.mubr.bf16.mxu0 0
  %205 = vmatmul.mubr.bf16.gmra.mrb[0].mxu0 %v114
  %v206 = vpop.f32.mrb[0].mxu0
  %v207 = vadd.f32 %v85, %v206
  %v208 = vpop.f32.mrb[0].mxu0
  %v209 = vadd.f32 %v85, %v208
  %v210 = vpop.f32.mrb[0].mxu0
  %v211 = vadd.f32 %v90, %v210
  %v212 = vpop.f32.mrb[0].mxu0
  %v213 = vadd.f32 %v90, %v212
  %214 = vmatprep.mubr.bf16.mxu0 0
  %215 = vmatmul.mubr.bf16.gmra.mrb[0].mxu0 %v117
  %v216 = vpop.f32.mrb[0].mxu0
  %v217 = vadd.f32 %v95, %v216
  %v218 = vpop.f32.mrb[0].mxu0
  %v219 = vadd.f32 %v95, %v218
  %v220 = vpop.f32.mrb[0].mxu0
  %v221 = vadd.f32 %v100, %v220
  %v222 = vpop.f32.mrb[0].mxu0
  %v223 = vadd.f32 %v100, %v222
  %224 = vdwg.mxu0
  %225 = vmatprep.subr.bf16.mxu0 %v61
  %226 = vmatpush1.bf16.msra.mxu0 %v60
  %227 = vmatprep.subr.bf16.mxu0 %v63
  %228 = vmatpush1.bf16.msra.mxu0 %v62
  %229 = vmatprep.subr.bf16.mxu0 %v65
  %230 = vmatpush1.bf16.msra.mxu0 %v64
  %231 = vmatprep.subr.bf16.mxu0 %v67
  %232 = vmatpush1.bf16.msra.mxu0 %v66
  %233 = vmatprep.subr.bf16.mxu0 0
  %234 = vmatpush1.bf16.msra.mxu0 0
  %235 = vmatprep.subr.bf16.mxu0 0
  %236 = vmatpush1.bf16.msra.mxu0 0
  %237 = vmatprep.subr.bf16.mxu0 0
  %238 = vmatpush1.bf16.msra.mxu0 0
  %239 = vmatprep.subr.bf16.mxu0 0
  %240 = vmatpush1.bf16.msra.mxu0 0
  %241 = vmatprep.subr.bf16.mxu0 0
  %242 = vmatpush1.bf16.msra.mxu0 0
  %243 = vmatprep.subr.bf16.mxu0 0
  %244 = vmatpush1.bf16.msra.mxu0 0
  %245 = vmatprep.subr.bf16.mxu0 0
  %246 = vmatpush1.bf16.msra.mxu0 0
  %247 = vmatprep.subr.bf16.mxu0 0
  %248 = vmatpush1.bf16.msra.mxu0 0
  %249 = vmatprep.subr.bf16.mxu0 0
  %250 = vmatpush1.bf16.msra.mxu0 0
  %251 = vmatprep.subr.bf16.mxu0 0
  %252 = vmatpush1.bf16.msra.mxu0 0
  %253 = vmatprep.subr.bf16.mxu0 0
  %254 = vmatpush1.bf16.msra.mxu0 0
  %255 = vmatprep.subr.bf16.mxu0 0
  %256 = vmatpush1.bf16.msra.mxu0 0
  %257 = vmatprep.mubr.bf16.mxu0 0
  %258 = vmatmul.mubr.bf16.gmra.mrb[0].mxu0 %v114
  %v259 = vpop.f32.mrb[0].mxu0
  %v260 = vadd.f32 %v85, %v259
  %v261 = vpop.f32.mrb[0].mxu0
  %v262 = vadd.f32 %v85, %v261
  %v263 = vpop.f32.mrb[0].mxu0
  %v264 = vadd.f32 %v90, %v263
  %v265 = vpop.f32.mrb[0].mxu0
  %v266 = vadd.f32 %v90, %v265
  %267 = vmatprep.mubr.bf16.mxu0 0
  %268 = vmatmul.mubr.bf16.gmra.mrb[0].mxu0 %v117
  %v269 = vpop.f32.mrb[0].mxu0
  %v270 = vadd.f32 %v95, %v269
  %v271 = vpop.f32.mrb[0].mxu0
  %v272 = vadd.f32 %v95, %v271
  %v273 = vpop.f32.mrb[0].mxu0
  %v274 = vadd.f32 %v100, %v273
  %v275 = vpop.f32.mrb[0].mxu0
  %v276 = vadd.f32 %v100, %v275
  %277 = vdwg.mxu0
  %278 = vmatprep.subr.bf16.mxu0 %v63
  %279 = vmatpush1.bf16.msra.mxu0 %v62
  %280 = vmatprep.subr.bf16.mxu0 %v65
  %281 = vmatpush1.bf16.msra.mxu0 %v64
  %282 = vmatprep.subr.bf16.mxu0 %v67
  %283 = vmatpush1.bf16.msra.mxu0 %v66
  %284 = vmatprep.subr.bf16.mxu0 %v69
  %285 = vmatpush1.bf16.msra.mxu0 %v68
  %286 = vmatprep.subr.bf16.mxu0 0
  %287 = vmatpush1.bf16.msra.mxu0 0
  %288 = vmatprep.subr.bf16.mxu0 0
  %289 = vmatpush1.bf16.msra.mxu0 0
  %290 = vmatprep.subr.bf16.mxu0 0
  %291 = vmatpush1.bf16.msra.mxu0 0
  %292 = vmatprep.subr.bf16.mxu0 0
  %293 = vmatpush1.bf16.msra.mxu0 0
  %294 = vmatprep.subr.bf16.mxu0 0
  %295 = vmatpush1.bf16.msra.mxu0 0
  %296 = vmatprep.subr.bf16.mxu0 0
  %297 = vmatpush1.bf16.msra.mxu0 0
  %298 = vmatprep.subr.bf16.mxu0 0
  %299 = vmatpush1.bf16.msra.mxu0 0
  %300 = vmatprep.subr.bf16.mxu0 0
  %301 = vmatpush1.bf16.msra.mxu0 0
  %302 = vmatprep.subr.bf16.mxu0 0
  %303 = vmatpush1.bf16.msra.mxu0 0
  %304 = vmatprep.subr.bf16.mxu0 0
  %305 = vmatpush1.bf16.msra.mxu0 0
  %306 = vmatprep.subr.bf16.mxu0 0
  %307 = vmatpush1.bf16.msra.mxu0 0
  %308 = vmatprep.subr.bf16.mxu0 0
  %309 = vmatpush1.bf16.msra.mxu0 0
  %310 = vmatprep.mubr.bf16.mxu0 0
  %311 = vmatmul.mubr.bf16.gmra.mrb[0].mxu0 %v114
  %v312 = vpop.f32.mrb[0].mxu0
  %v313 = vadd.f32 %v85, %v312
  %v314 = vpop.f32.mrb[0].mxu0
  %v315 = vadd.f32 %v85, %v314
  %v316 = vpop.f32.mrb[0].mxu0
  %v317 = vadd.f32 %v90, %v316
  %v318 = vpop.f32.mrb[0].mxu0
  %v319 = vadd.f32 %v90, %v318
  %320 = vmatprep.mubr.bf16.mxu0 0
  %321 = vmatmul.mubr.bf16.gmra.mrb[0].mxu0 %v117
  %v322 = vpop.f32.mrb[0].mxu0
  %v323 = vadd.f32 %v95, %v322
  %v324 = vpop.f32.mrb[0].mxu0
  %v325 = vadd.f32 %v95, %v324
  %v326 = vpop.f32.mrb[0].mxu0
  %v327 = vadd.f32 %v100, %v326
  %v328 = vpop.f32.mrb[0].mxu0
  %v329 = vadd.f32 %v100, %v328
  %330 = vdwg.mxu0
  %331 = vmatprep.subr.bf16.mxu0 %v65
  %332 = vmatpush1.bf16.msra.mxu0 %v64
  %333 = vmatprep.subr.bf16.mxu0 %v67
  %334 = vmatpush1.bf16.msra.mxu0 %v66
  %335 = vmatprep.subr.bf16.mxu0 %v69
  %336 = vmatpush1.bf16.msra.mxu0 %v68
  %337 = vmatprep.subr.bf16.mxu0 %v71
  %338 = vmatpush1.bf16.msra.mxu0 %v70
  %339 = vmatprep.subr.bf16.mxu0 0
  %340 = vmatpush1.bf16.msra.mxu0 0
  %341 = vmatprep.subr.bf16.mxu0 0
  %342 = vmatpush1.bf16.msra.mxu0 0
  %343 = vmatprep.subr.bf16.mxu0 0
  %344 = vmatpush1.bf16.msra.mxu0 0
  %345 = vmatprep.subr.bf16.mxu0 0
  %346 = vmatpush1.bf16.msra.mxu0 0
  %347 = vmatprep.subr.bf16.mxu0 0
  %348 = vmatpush1.bf16.msra.mxu0 0
  %349 = vmatprep.subr.bf16.mxu0 0
  %350 = vmatpush1.bf16.msra.mxu0 0
  %351 = vmatprep.subr.bf16.mxu0 0
  %352 = vmatpush1.bf16.msra.mxu0 0
  %353 = vmatprep.subr.bf16.mxu0 0
  %354 = vmatpush1.bf16.msra.mxu0 0
  %355 = vmatprep.subr.bf16.mxu0 0
  %356 = vmatpush1.bf16.msra.mxu0 0
  %357 = vmatprep.subr.bf16.mxu0 0
  %358 = vmatpush1.bf16.msra.mxu0 0
  %359 = vmatprep.subr.bf16.mxu0 0
  %360 = vmatpush1.bf16.msra.mxu0 0
  %361 = vmatprep.subr.bf16.mxu0 0
  %362 = vmatpush1.bf16.msra.mxu0 0
  %363 = vmatprep.mubr.bf16.mxu0 0
  %364 = vmatmul.mubr.bf16.gmra.mrb[0].mxu0 %v114
  %v365 = vpop.f32.mrb[0].mxu0
  %v366 = vadd.f32 %v85, %v365
  %v367 = vpop.f32.mrb[0].mxu0
  %v368 = vadd.f32 %v85, %v367
  %v369 = vpop.f32.mrb[0].mxu0
  %v370 = vadd.f32 %v90, %v369
  %v371 = vpop.f32.mrb[0].mxu0
  %v372 = vadd.f32 %v90, %v371
  %373 = vmatprep.mubr.bf16.mxu0 0
  %374 = vmatmul.mubr.bf16.gmra.mrb[0].mxu0 %v117
  %v375 = vpop.f32.mrb[0].mxu0
  %v376 = vadd.f32 %v95, %v375
  %v377 = vpop.f32.mrb[0].mxu0
  %v378 = vadd.f32 %v95, %v377
  %v379 = vpop.f32.mrb[0].mxu0
  %v380 = vadd.f32 %v100, %v379
  %v381 = vpop.f32.mrb[0].mxu0
  %v382 = vadd.f32 %v100, %v381
  %383 = vdwg.mxu0
  %384 = vmatprep.subr.bf16.mxu0 %v67
  %385 = vmatpush1.bf16.msra.mxu0 %v66
  %386 = vmatprep.subr.bf16.mxu0 %v69
  %387 = vmatpush1.bf16.msra.mxu0 %v68
  %388 = vmatprep.subr.bf16.mxu0 %v71
  %389 = vmatpush1.bf16.msra.mxu0 %v70
  %390 = vmatprep.subr.bf16.mxu0 %v73
  %391 = vmatpush1.bf16.msra.mxu0 %v72
  %392 = vmatprep.subr.bf16.mxu0 0
  %393 = vmatpush1.bf16.msra.mxu0 0
  %394 = vmatprep.subr.bf16.mxu0 0
  %395 = vmatpush1.bf16.msra.mxu0 0
  %396 = vmatprep.subr.bf16.mxu0 0
  %397 = vmatpush1.bf16.msra.mxu0 0
  %398 = vmatprep.subr.bf16.mxu0 0
  %399 = vmatpush1.bf16.msra.mxu0 0
  %400 = vmatprep.subr.bf16.mxu0 0
  %401 = vmatpush1.bf16.msra.mxu0 0
  %402 = vmatprep.subr.bf16.mxu0 0
  %403 = vmatpush1.bf16.msra.mxu0 0
  %404 = vmatprep.subr.bf16.mxu0 0
  %405 = vmatpush1.bf16.msra.mxu0 0
  %406 = vmatprep.subr.bf16.mxu0 0
  %407 = vmatpush1.bf16.msra.mxu0 0
  %408 = vmatprep.subr.bf16.mxu0 0
  %409 = vmatpush1.bf16.msra.mxu0 0
  %410 = vmatprep.subr.bf16.mxu0 0
  %411 = vmatpush1.bf16.msra.mxu0 0
  %412 = vmatprep.subr.bf16.mxu0 0
  %413 = vmatpush1.bf16.msra.mxu0 0
  %414 = vmatprep.subr.bf16.mxu0 0
  %415 = vmatpush1.bf16.msra.mxu0 0
  %416 = vmatprep.mubr.bf16.mxu0 0
  %417 = vmatmul.mubr.bf16.gmra.mrb[0].mxu0 %v114
  %v418 = vpop.f32.mrb[0].mxu0
  %v419 = vadd.f32 %v85, %v418
  %v420 = vpop.f32.mrb[0].mxu0
  %v421 = vadd.f32 %v85, %v420
  %v422 = vpop.f32.mrb[0].mxu0
  %v423 = vadd.f32 %v90, %v422
  %v424 = vpop.f32.mrb[0].mxu0
  %v425 = vadd.f32 %v90, %v424
  %426 = vmatprep.mubr.bf16.mxu0 0
  %427 = vmatmul.mubr.bf16.gmra.mrb[0].mxu0 %v117
  %v428 = vpop.f32.mrb[0].mxu0
  %v429 = vadd.f32 %v95, %v428
  %v430 = vpop.f32.mrb[0].mxu0
  %v431 = vadd.f32 %v95, %v430
  %v432 = vpop.f32.mrb[0].mxu0
  %v433 = vadd.f32 %v100, %v432
  %v434 = vpop.f32.mrb[0].mxu0
  %v435 = vadd.f32 %v100, %v434
  %436 = vdwg.mxu0
  %437 = vmatprep.subr.bf16.mxu0 %v69
  %438 = vmatpush1.bf16.msra.mxu0 %v68
  %439 = vmatprep.subr.bf16.mxu0 %v71
  %440 = vmatpush1.bf16.msra.mxu0 %v70
  %441 = vmatprep.subr.bf16.mxu0 %v73
  %442 = vmatpush1.bf16.msra.mxu0 %v72
  %443 = vmatprep.subr.bf16.mxu0 %v75
  %444 = vmatpush1.bf16.msra.mxu0 %v74
  %445 = vmatprep.subr.bf16.mxu0 0
  %446 = vmatpush1.bf16.msra.mxu0 0
  %447 = vmatprep.subr.bf16.mxu0 0
  %448 = vmatpush1.bf16.msra.mxu0 0
  %449 = vmatprep.subr.bf16.mxu0 0
  %450 = vmatpush1.bf16.msra.mxu0 0
  %451 = vmatprep.subr.bf16.mxu0 0
  %452 = vmatpush1.bf16.msra.mxu0 0
  %453 = vmatprep.subr.bf16.mxu0 0
  %454 = vmatpush1.bf16.msra.mxu0 0
  %455 = vmatprep.subr.bf16.mxu0 0
  %456 = vmatpush1.bf16.msra.mxu0 0
  %457 = vmatprep.subr.bf16.mxu0 0
  %458 = vmatpush1.bf16.msra.mxu0 0
  %459 = vmatprep.subr.bf16.mxu0 0
  %460 = vmatpush1.bf16.msra.mxu0 0
  %461 = vmatprep.subr.bf16.mxu0 0
  %462 = vmatpush1.bf16.msra.mxu0 0
  %463 = vmatprep.subr.bf16.mxu0 0
  %464 = vmatpush1.bf16.msra.mxu0 0
  %465 = vmatprep.subr.bf16.mxu0 0
  %466 = vmatpush1.bf16.msra.mxu0 0
  %467 = vmatprep.subr.bf16.mxu0 0
  %468 = vmatpush1.bf16.msra.mxu0 0
  %469 = vmatprep.mubr.bf16.mxu0 0
  %470 = vmatmul.mubr.bf16.gmra.mrb[0].mxu0 %v114
  %v471 = vpop.f32.mrb[0].mxu0
  %v472 = vadd.f32 %v85, %v471
  %v473 = vpop.f32.mrb[0].mxu0
  %v474 = vadd.f32 %v85, %v473
  %v475 = vpop.f32.mrb[0].mxu0
  %v476 = vadd.f32 %v90, %v475
  %v477 = vpop.f32.mrb[0].mxu0
  %v478 = vadd.f32 %v90, %v477
  %479 = vmatprep.mubr.bf16.mxu0 0
  %480 = vmatmul.mubr.bf16.gmra.mrb[0].mxu0 %v117
  %v481 = vpop.f32.mrb[0].mxu0
  %v482 = vadd.f32 %v95, %v481
  %v483 = vpop.f32.mrb[0].mxu0
  %v484 = vadd.f32 %v95, %v483
  %v485 = vpop.f32.mrb[0].mxu0
  %v486 = vadd.f32 %v100, %v485
  %v487 = vpop.f32.mrb[0].mxu0
  %v488 = vadd.f32 %v100, %v487
  %489 = vdwg.mxu0
  %490 = vmatprep.subr.bf16.mxu0 %v71
  %491 = vmatpush1.bf16.msra.mxu0 %v70
  %492 = vmatprep.subr.bf16.mxu0 %v73
  %493 = vmatpush1.bf16.msra.mxu0 %v72
  %494 = vmatprep.subr.bf16.mxu0 %v75
  %495 = vmatpush1.bf16.msra.mxu0 %v74
  %496 = vmatprep.subr.bf16.mxu0 %v77
  %497 = vmatpush1.bf16.msra.mxu0 %v76
  %498 = vmatprep.subr.bf16.mxu0 0
  %499 = vmatpush1.bf16.msra.mxu0 0
  %500 = vmatprep.subr.bf16.mxu0 0
  %501 = vmatpush1.bf16.msra.mxu0 0
  %502 = vmatprep.subr.bf16.mxu0 0
  %503 = vmatpush1.bf16.msra.mxu0 0
  %504 = vmatprep.subr.bf16.mxu0 0
  %505 = vmatpush1.bf16.msra.mxu0 0
  %506 = vmatprep.subr.bf16.mxu0 0
  %507 = vmatpush1.bf16.msra.mxu0 0
  %508 = vmatprep.subr.bf16.mxu0 0
  %509 = vmatpush1.bf16.msra.mxu0 0
  %510 = vmatprep.subr.bf16.mxu0 0
  %511 = vmatpush1.bf16.msra.mxu0 0
  %512 = vmatprep.subr.bf16.mxu0 0
  %513 = vmatpush1.bf16.msra.mxu0 0
  %514 = vmatprep.subr.bf16.mxu0 0
  %515 = vmatpush1.bf16.msra.mxu0 0
  %516 = vmatprep.subr.bf16.mxu0 0
  %517 = vmatpush1.bf16.msra.mxu0 0
  %518 = vmatprep.subr.bf16.mxu0 0
  %519 = vmatpush1.bf16.msra.mxu0 0
  %520 = vmatprep.subr.bf16.mxu0 0
  %521 = vmatpush1.bf16.msra.mxu0 0
  %522 = vmatprep.mubr.bf16.mxu0 0
  %523 = vmatmul.mubr.bf16.gmra.mrb[0].mxu0 %v114
  %v524 = vpop.f32.mrb[0].mxu0
  %v525 = vadd.f32 %v85, %v524
  %v526 = vpop.f32.mrb[0].mxu0
  %v527 = vadd.f32 %v85, %v526
  %v528 = vpop.f32.mrb[0].mxu0
  %v529 = vadd.f32 %v90, %v528
  %v530 = vpop.f32.mrb[0].mxu0
  %v531 = vadd.f32 %v90, %v530
  %532 = vmatprep.mubr.bf16.mxu0 0
  %533 = vmatmul.mubr.bf16.gmra.mrb[0].mxu0 %v117
  %v534 = vpop.f32.mrb[0].mxu0
  %v535 = vadd.f32 %v95, %v534
  %v536 = vpop.f32.mrb[0].mxu0
  %v537 = vadd.f32 %v95, %v536
  %v538 = vpop.f32.mrb[0].mxu0
  %v539 = vadd.f32 %v100, %v538
  %v540 = vpop.f32.mrb[0].mxu0
  %v541 = vadd.f32 %v100, %v540
  %542 = vdwg.mxu0
  %v543 = vmax.f32 %v154, 0.0
  %v544 = vmax.f32 %v156, 0.0
  %v545 = vmax.f32 %v207, 0.0
  %v546 = vmax.f32 %v209, 0.0
  %v547 = vmax.f32 %v260, 0.0
  %v548 = vmax.f32 %v262, 0.0
  %v549 = vmax.f32 %v313, 0.0
  %v550 = vmax.f32 %v315, 0.0
  %v551 = vmax.f32 %v366, 0.0
  %v552 = vmax.f32 %v368, 0.0
  %v553 = vmax.f32 %v419, 0.0
  %v554 = vmax.f32 %v421, 0.0
  %v555 = vmax.f32 %v472, 0.0
  %v556 = vmax.f32 %v474, 0.0
  %v557 = vmax.f32 %v525, 0.0
  %v558 = vmax.f32 %v527, 0.0
  %v559 = vmax.f32 %v158, 0.0
  %v560 = vmax.f32 %v160, 0.0
  %v561 = vmax.f32 %v211, 0.0
  %v562 = vmax.f32 %v213, 0.0
  %v563 = vmax.f32 %v264, 0.0
  %v564 = vmax.f32 %v266, 0.0
  %v565 = vmax.f32 %v317, 0.0
  %v566 = vmax.f32 %v319, 0.0
  %v567 = vmax.f32 %v370, 0.0
  %v568 = vmax.f32 %v372, 0.0
  %v569 = vmax.f32 %v423, 0.0
  %v570 = vmax.f32 %v425, 0.0
  %v571 = vmax.f32 %v476, 0.0
  %v572 = vmax.f32 %v478, 0.0
  %v573 = vmax.f32 %v529, 0.0
  %v574 = vmax.f32 %v531, 0.0
  %v575 = vmax.f32 %v164, 0.0
  %v576 = vmax.f32 %v166, 0.0
  %v577 = vmax.f32 %v217, 0.0
  %v578 = vmax.f32 %v219, 0.0
  %v579 = vmax.f32 %v270, 0.0
  %v580 = vmax.f32 %v272, 0.0
  %v581 = vmax.f32 %v323, 0.0
  %v582 = vmax.f32 %v325, 0.0
  %v583 = vmax.f32 %v376, 0.0
  %v584 = vmax.f32 %v378, 0.0
  %v585 = vmax.f32 %v429, 0.0
  %v586 = vmax.f32 %v431, 0.0
  %v587 = vmax.f32 %v482, 0.0
  %v588 = vmax.f32 %v484, 0.0
  %v589 = vmax.f32 %v535, 0.0
  %v590 = vmax.f32 %v537, 0.0
  %v591 = vmax.f32 %v168, 0.0
  %v592 = vmax.f32 %v170, 0.0
  %v593 = vmax.f32 %v221, 0.0
  %v594 = vmax.f32 %v223, 0.0
  %v595 = vmax.f32 %v274, 0.0
  %v596 = vmax.f32 %v276, 0.0
  %v597 = vmax.f32 %v327, 0.0
  %v598 = vmax.f32 %v329, 0.0
  %v599 = vmax.f32 %v380, 0.0
  %v600 = vmax.f32 %v382, 0.0
  %v601 = vmax.f32 %v433, 0.0
  %v602 = vmax.f32 %v435, 0.0
  %v603 = vmax.f32 %v486, 0.0
  %v604 = vmax.f32 %v488, 0.0
  %v605 = vmax.f32 %v539, 0.0
  %v606 = vmax.f32 %v541, 0.0
  %607 = vst [vmem:[#allocation2] sm:$0xff] 0
  %608 = vst [vmem:[#allocation2 + $0x8] sm:$0xff] 0
  %609 = vst [vmem:[#allocation2 + $0x10] sm:$0xff] 0
  %610 = vst [vmem:[#allocation2 + $0x18] sm:$0xff] 0
  %611 = vst [vmem:[#allocation2 + $0x20] sm:$0xff] 0
  %612 = vst [vmem:[#allocation2 + $0x28] sm:$0xff] 0
  %613 = vst [vmem:[#allocation2 + $0x30] sm:$0xff] 0
  %614 = vst [vmem:[#allocation2 + $0x38] sm:$0xff] 0
  %615 = vst [vmem:[#allocation2 + $0x40] sm:$0xff] 0
  %616 = vst [vmem:[#allocation2 + $0x48] sm:$0xff] 0
  %617 = vst [vmem:[#allocation2 + $0x50] sm:$0xff] 0
  %618 = vst [vmem:[#allocation2 + $0x58] sm:$0xff] 0
  %619 = vst [vmem:[#allocation2 + $0x60] sm:$0xff] 0
  %620 = vst [vmem:[#allocation2 + $0x68] sm:$0xff] 0
  %621 = vst [vmem:[#allocation2 + $0x70] sm:$0xff] 0
  %622 = vst [vmem:[#allocation2 + $0x78] sm:$0xff] 0
  %623 = vst [vmem:[#allocation2 + $0x80] sm:$0xff] 0
  %624 = vst [vmem:[#allocation2 + $0x88] sm:$0xff] 0
  %625 = vst [vmem:[#allocation2 + $0x90] sm:$0xff] 0
  %626 = vst [vmem:[#allocation2 + $0x98] sm:$0xff] 0
  %627 = vst [vmem:[#allocation2 + $0xa0] sm:$0xff] 0
  %628 = vst [vmem:[#allocation2 + $0xa8] sm:$0xff] 0
  %629 = vst [vmem:[#allocation2 + $0xb0] sm:$0xff] 0
  %630 = vst [vmem:[#allocation2 + $0xb8] sm:$0xff] 0
  %631 = vst [vmem:[#allocation2 + $0xc0] sm:$0xff] 0
  %632 = vst [vmem:[#allocation2 + $0xc8] sm:$0xff] 0
  %v633 = vmax.f32 %v543, %v544
  %v634 = vmax.f32 %v559, %v560
  %v635 = vmax.f32 %v575, %v576
  %v636 = vmax.f32 %v591, %v592
  %v637 = vpack.c.bf16 %v634, %v633
  %v638 = vpack.c.bf16 %v636, %v635
  %639 = vst [vmem:[#allocation2 + $0x10] sm:$0xff] %v637
  %640 = vst [vmem:[#allocation2 + $0x78] sm:$0xff] %v638
  %v641 = vmax.f32 %v545, %v546
  %v642 = vmax.f32 %v561, %v562
  %v643 = vmax.f32 %v577, %v578
  %v644 = vmax.f32 %v593, %v594
  %v645 = vpack.c.bf16 %v642, %v641
  %v646 = vpack.c.bf16 %v644, %v643
  %647 = vst [vmem:[#allocation2 + $0x18] sm:$0xff] %v645
  %648 = vst [vmem:[#allocation2 + $0x80] sm:$0xff] %v646
  %v649 = vmax.f32 %v547, %v548
  %v650 = vmax.f32 %v563, %v564
  %v651 = vmax.f32 %v579, %v580
  %v652 = vmax.f32 %v595, %v596
  %v653 = vpack.c.bf16 %v650, %v649
  %v654 = vpack.c.bf16 %v652, %v651
  %655 = vst [vmem:[#allocation2 + $0x20] sm:$0xff] %v653
  %656 = vst [vmem:[#allocation2 + $0x88] sm:$0xff] %v654
  %v657 = vmax.f32 %v549, %v550
  %v658 = vmax.f32 %v565, %v566
  %v659 = vmax.f32 %v581, %v582
  %v660 = vmax.f32 %v597, %v598
  %v661 = vpack.c.bf16 %v658, %v657
  %v662 = vpack.c.bf16 %v660, %v659
  %663 = vst [vmem:[#allocation2 + $0x28] sm:$0xff] %v661
  %664 = vst [vmem:[#allocation2 + $0x90] sm:$0xff] %v662
  %v665 = vmax.f32 %v551, %v552
  %v666 = vmax.f32 %v567, %v568
  %v667 = vmax.f32 %v583, %v584
  %v668 = vmax.f32 %v599, %v600
  %v669 = vpack.c.bf16 %v666, %v665
  %v670 = vpack.c.bf16 %v668, %v667
  %671 = vst [vmem:[#allocation2 + $0x30] sm:$0xff] %v669
  %672 = vst [vmem:[#allocation2 + $0x98] sm:$0xff] %v670
  %v673 = vmax.f32 %v553, %v554
  %v674 = vmax.f32 %v569, %v570
  %v675 = vmax.f32 %v585, %v586
  %v676 = vmax.f32 %v601, %v602
  %v677 = vpack.c.bf16 %v674, %v673
  %v678 = vpack.c.bf16 %v676, %v675
  %679 = vst [vmem:[#allocation2 + $0x38] sm:$0xff] %v677
  %680 = vst [vmem:[#allocation2 + $0xa0] sm:$0xff] %v678
  %v681 = vmax.f32 %v555, %v556
  %v682 = vmax.f32 %v571, %v572
  %v683 = vmax.f32 %v587, %v588
  %v684 = vmax.f32 %v603, %v604
  %v685 = vpack.c.bf16 %v682, %v681
  %v686 = vpack.c.bf16 %v684, %v683
  %687 = vst [vmem:[#allocation2 + $0x40] sm:$0xff] %v685
  %688 = vst [vmem:[#allocation2 + $0xa8] sm:$0xff] %v686
  %v689 = vmax.f32 %v557, %v558
  %v690 = vmax.f32 %v573, %v574
  %v691 = vmax.f32 %v589, %v590
  %v692 = vmax.f32 %v605, %v606
  %v693 = vpack.c.bf16 %v690, %v689
  %v694 = vpack.c.bf16 %v692, %v691
  %695 = vst [vmem:[#allocation2 + $0x48] sm:$0xff] %v693
  %696 = vst [vmem:[#allocation2 + $0xb0] sm:$0xff] %v694
  %v697 = vld [vmem:[#allocation2] sm:$0xff]
  %v698 = vld [vmem:[#allocation2 + $0x8] sm:$0xff]
  %v699 = vld [vmem:[#allocation2 + $0x10] sm:$0xff]
  %v700 = vld [vmem:[#allocation2 + $0x18] sm:$0xff]
  %v701 = vld [vmem:[#allocation2 + $0x20] sm:$0xff]
  %v702 = vld [vmem:[#allocation2 + $0x28] sm:$0xff]
  %v703 = vld [vmem:[#allocation2 + $0x30] sm:$0xff]
  %v704 = vld [vmem:[#allocation2 + $0x38] sm:$0xff]
  %v705 = vld [vmem:[#allocation2 + $0x68] sm:$0xff]
  %v706 = vld [vmem:[#allocation2 + $0x70] sm:$0xff]
  %v707 = vld [vmem:[#allocation2 + $0x78] sm:$0xff]
  %v708 = vld [vmem:[#allocation2 + $0x80] sm:$0xff]
  %v709 = vld [vmem:[#allocation2 + $0x88] sm:$0xff]
  %v710 = vld [vmem:[#allocation2 + $0x90] sm:$0xff]
  %v711 = vld [vmem:[#allocation2 + $0x98] sm:$0xff]
  %v712 = vld [vmem:[#allocation2 + $0xa0] sm:$0xff]
  %v713 = vld [vmem:[#allocation2 + $0x40] sm:$0xff]
  %v714 = vld [vmem:[#allocation2 + $0xa8] sm:$0xff]
  %v715 = vld [vmem:[#allocation2 + $0x48] sm:$0xff]
  %v716 = vld [vmem:[#allocation2 + $0xb0] sm:$0xff]
  %v717 = vld [vmem:[#allocation2 + $0x50] sm:$0xff]
  %v718 = vld [vmem:[#allocation2 + $0xb8] sm:$0xff]
  %v719 = vld [vmem:[#allocation2 + $0x58] sm:$0xff]
  %v720 = vld [vmem:[#allocation2 + $0xc0] sm:$0xff]
  %v721 = vld [vmem:[#allocation2 + $0x28] sm:$0xff]
  %v722 = vld [vmem:[#allocation2 + $0x30] sm:$0xff]
  %v723 = vld [vmem:[#allocation2 + $0x38] sm:$0xff]
  %v724 = vld [vmem:[#allocation2 + $0x40] sm:$0xff]
  %v725 = vld [vmem:[#allocation2 + $0x48] sm:$0xff]
  %v726 = vld [vmem:[#allocation2 + $0x50] sm:$0xff]
  %v727 = vld [vmem:[#allocation2 + $0x58] sm:$0xff]
  %v728 = vld [vmem:[#allocation2 + $0x60] sm:$0xff]
  %v729 = vld [vmem:[#allocation2 + $0x90] sm:$0xff]
  %v730 = vld [vmem:[#allocation2 + $0x98] sm:$0xff]
  %v731 = vld [vmem:[#allocation2 + $0xa0] sm:$0xff]
  %v732 = vld [vmem:[#allocation2 + $0xa8] sm:$0xff]
  %v733 = vld [vmem:[#allocation2 + $0xb0] sm:$0xff]
  %v734 = vld [vmem:[#allocation2 + $0xb8] sm:$0xff]
  %v735 = vld [vmem:[#allocation2 + $0xc0] sm:$0xff]
  %v736 = vld [vmem:[#allocation2 + $0xc8] sm:$0xff]
  %v737 = vld [vmem:[%s3] sm:$0xff]
  %v738 = vld [vmem:[%s3 + $0x8] sm:$0xff]
  %v739 = vld [vmem:[%s3 + $0x10] sm:$0xff]
  %v740 = vld [vmem:[%s3 + $0x18] sm:$0xff]
  %v741 = vld [vmem:[%s3 + $0x20] sm:$0xff]
  %v742 = vld [vmem:[%s3 + $0x28] sm:$0xff]
  %v743 = vld [vmem:[%s3 + $0x30] sm:$0xff]
  %v744 = vld [vmem:[%s3 + $0x38] sm:$0xff]
  %v745 = vld [vmem:[%s4] sm:$0xff]
  %v746 = vld [vmem:[%s4 + $0x8] sm:$0xff]
  %v747 = vld [vmem:[%s4 + $0x10] sm:$0xff]
  %v748 = vld [vmem:[%s4 + $0x18] sm:$0xff]
  %v749 = vld [vmem:[%s4 + $0x20] sm:$0xff]
  %v750 = vld [vmem:[%s4 + $0x28] sm:$0xff]
  %v751 = vld [vmem:[%s4 + $0x30] sm:$0xff]
  %v752 = vld [vmem:[%s4 + $0x38] sm:$0xff]
  %754 = vset.pattern.permute.xlu0 0
  %755 = vperm.xlu0 %754, %v745
  %v756 = vpop.permute.xlu0 %755
  %759 = vset.pattern.permute.xlu0 0
  %760 = vperm.xlu0 %759, %v746
  %v761 = vpop.permute.xlu0 %760
  %764 = vset.pattern.permute.xlu0 0
  %765 = vperm.xlu0 %764, %v747
  %v766 = vpop.permute.xlu0 %765
  %769 = vset.pattern.permute.xlu0 0
  %770 = vperm.xlu0 %769, %v748
  %v771 = vpop.permute.xlu0 %770
  %774 = vset.pattern.permute.xlu0 0
  %775 = vperm.xlu0 %774, %v749
  %v776 = vpop.permute.xlu0 %775
  %779 = vset.pattern.permute.xlu0 0
  %780 = vperm.xlu0 %779, %v750
  %v781 = vpop.permute.xlu0 %780
  %784 = vset.pattern.permute.xlu0 0
  %785 = vperm.xlu0 %784, %v751
  %v786 = vpop.permute.xlu0 %785
  %789 = vset.pattern.permute.xlu0 0
  %790 = vperm.xlu0 %789, %v752
  %v791 = vpop.permute.xlu0 %790
  %v801 = vunpack.c.l.b16 %v737
  %v802 = vunpack.c.h.b16 %v737
  %v803 = vunpack.c.l.b16 %v738
  %v804 = vunpack.c.h.b16 %v738
  %v805 = vunpack.c.l.b16 %v739
  %v806 = vunpack.c.h.b16 %v739
  %v807 = vunpack.c.l.b16 %v740
  %v808 = vunpack.c.h.b16 %v740
  %v809 = vunpack.c.l.b16 %v741
  %v810 = vunpack.c.h.b16 %v741
  %v811 = vunpack.c.l.b16 %v742
  %v812 = vunpack.c.h.b16 %v742
  %v813 = vunpack.c.l.b16 %v743
  %v814 = vunpack.c.h.b16 %v743
  %v815 = vunpack.c.l.b16 %v744
  %v816 = vunpack.c.h.b16 %v744
  %v817 = vpack.c.b16 %v803, %v801
  %v818 = vpack.c.b16 %v804, %v802
  %v819 = vpack.c.b16 %v807, %v805
  %v820 = vpack.c.b16 %v808, %v806
  %v821 = vpack.c.b16 %v811, %v809
  %v822 = vpack.c.b16 %v812, %v810
  %v823 = vpack.c.b16 %v815, %v813
  %v824 = vpack.c.b16 %v816, %v814
  %v830 = vsel %vm112, %v818, 0
  %v833 = vsel %vm112, %v820, 0
  %v836 = vsel %vm112, %v822, 0
  %v839 = vsel %vm112, %v824, 0
  %841 = vmatprep.subr.bf16.mxu0 %v698
  %842 = vmatpush1.bf16.msra.mxu0 %v697
  %843 = vmatprep.subr.bf16.mxu0 %v706
  %844 = vmatpush1.bf16.msra.mxu0 %v705
  %845 = vmatprep.subr.bf16.mxu0 %v699
  %846 = vmatpush1.bf16.msra.mxu0 %v698
  %847 = vmatprep.subr.bf16.mxu0 %v707
  %848 = vmatpush1.bf16.msra.mxu0 %v706
  %849 = vmatprep.subr.bf16.mxu0 %v700
  %850 = vmatpush1.bf16.msra.mxu0 %v699
  %851 = vmatprep.subr.bf16.mxu0 %v708
  %852 = vmatpush1.bf16.msra.mxu0 %v707
  %853 = vmatprep.subr.bf16.mxu0 %v701
  %854 = vmatpush1.bf16.msra.mxu0 %v700
  %855 = vmatprep.subr.bf16.mxu0 %v709
  %856 = vmatpush1.bf16.msra.mxu0 %v708
  %857 = vmatprep.subr.bf16.mxu0 %v702
  %858 = vmatpush1.bf16.msra.mxu0 %v701
  %859 = vmatprep.subr.bf16.mxu0 %v710
  %860 = vmatpush1.bf16.msra.mxu0 %v709
  %861 = vmatprep.subr.bf16.mxu0 %v722
  %862 = vmatpush1.bf16.msra.mxu0 %v721
  %863 = vmatprep.subr.bf16.mxu0 %v730
  %864 = vmatpush1.bf16.msra.mxu0 %v729
  %865 = vmatprep.subr.bf16.mxu0 0
  %866 = vmatpush1.bf16.msra.mxu0 0
  %867 = vmatprep.subr.bf16.mxu0 0
  %868 = vmatpush1.bf16.msra.mxu0 0
  %869 = vmatprep.subr.bf16.mxu0 0
  %870 = vmatpush1.bf16.msra.mxu0 0
  %871 = vmatprep.subr.bf16.mxu0 0
  %872 = vmatpush1.bf16.msra.mxu0 0
  %873 = vmatprep.mubr.bf16.mxu0 %v830
  %874 = vmatmul.mubr.bf16.gmra.mrb[0].mxu0 %v817
  %v875 = vpop.f32.mrb[0].mxu0
  %v876 = vadd.f32 %v756, %v875
  %v877 = vpop.f32.mrb[0].mxu0
  %v878 = vadd.f32 %v756, %v877
  %v879 = vpop.f32.mrb[0].mxu0
  %v880 = vadd.f32 %v761, %v879
  %v881 = vpop.f32.mrb[0].mxu0
  %v882 = vadd.f32 %v761, %v881
  %883 = vmatprep.mubr.bf16.mxu0 %v833
  %884 = vmatmul.mubr.bf16.gmra.mrb[0].mxu0 %v819
  %v885 = vpop.f32.mrb[0].mxu0
  %v886 = vadd.f32 %v766, %v885
  %v887 = vpop.f32.mrb[0].mxu0
  %v888 = vadd.f32 %v766, %v887
  %v889 = vpop.f32.mrb[0].mxu0
  %v890 = vadd.f32 %v771, %v889
  %v891 = vpop.f32.mrb[0].mxu0
  %v892 = vadd.f32 %v771, %v891
  %893 = vmatprep.mubr.bf16.mxu0 %v836
  %894 = vmatmul.mubr.bf16.gmra.mrb[0].mxu0 %v821
  %v895 = vpop.f32.mrb[0].mxu0
  %v896 = vadd.f32 %v776, %v895
  %v897 = vpop.f32.mrb[0].mxu0
  %v898 = vadd.f32 %v776, %v897
  %v899 = vpop.f32.mrb[0].mxu0
  %v900 = vadd.f32 %v781, %v899
  %v901 = vpop.f32.mrb[0].mxu0
  %v902 = vadd.f32 %v781, %v901
  %903 = vmatprep.mubr.bf16.mxu0 %v839
  %904 = vmatmul.mubr.bf16.gmra.mrb[0].mxu0 %v823
  %v905 = vpop.f32.mrb[0].mxu0
  %v906 = vadd.f32 %v786, %v905
  %v907 = vpop.f32.mrb[0].mxu0
  %v908 = vadd.f32 %v786, %v907
  %v909 = vpop.f32.mrb[0].mxu0
  %v910 = vadd.f32 %v791, %v909
  %v911 = vpop.f32.mrb[0].mxu0
  %v912 = vadd.f32 %v791, %v911
  %913 = vdwg.mxu0
  %914 = vmatprep.subr.bf16.mxu0 %v700
  %915 = vmatpush1.bf16.msra.mxu0 %v699
  %916 = vmatprep.subr.bf16.mxu0 %v708
  %917 = vmatpush1.bf16.msra.mxu0 %v707
  %918 = vmatprep.subr.bf16.mxu0 %v701
  %919 = vmatpush1.bf16.msra.mxu0 %v700
  %920 = vmatprep.subr.bf16.mxu0 %v709
  %921 = vmatpush1.bf16.msra.mxu0 %v708
  %922 = vmatprep.subr.bf16.mxu0 %v702
  %923 = vmatpush1.bf16.msra.mxu0 %v701
  %924 = vmatprep.subr.bf16.mxu0 %v710
  %925 = vmatpush1.bf16.msra.mxu0 %v709
  %926 = vmatprep.subr.bf16.mxu0 %v703
  %927 = vmatpush1.bf16.msra.mxu0 %v702
  %928 = vmatprep.subr.bf16.mxu0 %v711
  %929 = vmatpush1.bf16.msra.mxu0 %v710
  %930 = vmatprep.subr.bf16.mxu0 %v704
  %931 = vmatpush1.bf16.msra.mxu0 %v703
  %932 = vmatprep.subr.bf16.mxu0 %v712
  %933 = vmatpush1.bf16.msra.mxu0 %v711
  %934 = vmatprep.subr.bf16.mxu0 %v724
  %935 = vmatpush1.bf16.msra.mxu0 %v723
  %936 = vmatprep.subr.bf16.mxu0 %v732
  %937 = vmatpush1.bf16.msra.mxu0 %v731
  %938 = vmatprep.subr.bf16.mxu0 0
  %939 = vmatpush1.bf16.msra.mxu0 0
  %940 = vmatprep.subr.bf16.mxu0 0
  %941 = vmatpush1.bf16.msra.mxu0 0
  %942 = vmatprep.subr.bf16.mxu0 0
  %943 = vmatpush1.bf16.msra.mxu0 0
  %944 = vmatprep.subr.bf16.mxu0 0
  %945 = vmatpush1.bf16.msra.mxu0 0
  %946 = vmatprep.mubr.bf16.mxu0 %v830
  %947 = vmatmul.mubr.bf16.gmra.mrb[0].mxu0 %v817
  %v948 = vpop.f32.mrb[0].mxu0
  %v949 = vadd.f32 %v756, %v948
  %v950 = vpop.f32.mrb[0].mxu0
  %v951 = vadd.f32 %v756, %v950
  %v952 = vpop.f32.mrb[0].mxu0
  %v953 = vadd.f32 %v761, %v952
  %v954 = vpop.f32.mrb[0].mxu0
  %v955 = vadd.f32 %v761, %v954
  %956 = vmatprep.mubr.bf16.mxu0 %v833
  %957 = vmatmul.mubr.bf16.gmra.mrb[0].mxu0 %v819
  %v958 = vpop.f32.mrb[0].mxu0
  %v959 = vadd.f32 %v766, %v958
  %v960 = vpop.f32.mrb[0].mxu0
  %v961 = vadd.f32 %v766, %v960
  %v962 = vpop.f32.mrb[0].mxu0
  %v963 = vadd.f32 %v771, %v962
  %v964 = vpop.f32.mrb[0].mxu0
  %v965 = vadd.f32 %v771, %v964
  %966 = vmatprep.mubr.bf16.mxu0 %v836
  %967 = vmatmul.mubr.bf16.gmra.mrb[0].mxu0 %v821
  %v968 = vpop.f32.mrb[0].mxu0
  %v969 = vadd.f32 %v776, %v968
  %v970 = vpop.f32.mrb[0].mxu0
  %v971 = vadd.f32 %v776, %v970
  %v972 = vpop.f32.mrb[0].mxu0
  %v973 = vadd.f32 %v781, %v972
  %v974 = vpop.f32.mrb[0].mxu0
  %v975 = vadd.f32 %v781, %v974
  %976 = vmatprep.mubr.bf16.mxu0 %v839
  %977 = vmatmul.mubr.bf16.gmra.mrb[0].mxu0 %v823
  %v978 = vpop.f32.mrb[0].mxu0
  %v979 = vadd.f32 %v786, %v978
  %v980 = vpop.f32.mrb[0].mxu0
  %v981 = vadd.f32 %v786, %v980
  %v982 = vpop.f32.mrb[0].mxu0
  %v983 = vadd.f32 %v791, %v982
  %v984 = vpop.f32.mrb[0].mxu0
  %v985 = vadd.f32 %v791, %v984
  %986 = vdwg.mxu0
  %987 = vmatprep.subr.bf16.mxu0 %v702
  %988 = vmatpush1.bf16.msra.mxu0 %v701
  %989 = vmatprep.subr.bf16.mxu0 %v710
  %990 = vmatpush1.bf16.msra.mxu0 %v709
  %991 = vmatprep.subr.bf16.mxu0 %v703
  %992 = vmatpush1.bf16.msra.mxu0 %v702
  %993 = vmatprep.subr.bf16.mxu0 %v711
  %994 = vmatpush1.bf16.msra.mxu0 %v710
  %995 = vmatprep.subr.bf16.mxu0 %v704
  %996 = vmatpush1.bf16.msra.mxu0 %v703
  %997 = vmatprep.subr.bf16.mxu0 %v712
  %998 = vmatpush1.bf16.msra.mxu0 %v711
  %999 = vmatprep.subr.bf16.mxu0 %v713
  %1000 = vmatpush1.bf16.msra.mxu0 %v704
  %1001 = vmatprep.subr.bf16.mxu0 %v714
  %1002 = vmatpush1.bf16.msra.mxu0 %v712
  %1003 = vmatprep.subr.bf16.mxu0 %v715
  %1004 = vmatpush1.bf16.msra.mxu0 %v713
  %1005 = vmatprep.subr.bf16.mxu0 %v716
  %1006 = vmatpush1.bf16.msra.mxu0 %v714
  %1007 = vmatprep.subr.bf16.mxu0 %v726
  %1008 = vmatpush1.bf16.msra.mxu0 %v725
  %1009 = vmatprep.subr.bf16.mxu0 %v734
  %1010 = vmatpush1.bf16.msra.mxu0 %v733
  %1011 = vmatprep.subr.bf16.mxu0 0
  %1012 = vmatpush1.bf16.msra.mxu0 0
  %1013 = vmatprep.subr.bf16.mxu0 0
  %1014 = vmatpush1.bf16.msra.mxu0 0
  %1015 = vmatprep.subr.bf16.mxu0 0
  %1016 = vmatpush1.bf16.msra.mxu0 0
  %1017 = vmatprep.subr.bf16.mxu0 0
  %1018 = vmatpush1.bf16.msra.mxu0 0
  %1019 = vmatprep.mubr.bf16.mxu0 %v830
  %1020 = vmatmul.mubr.bf16.gmra.mrb[0].mxu0 %v817
  %v1021 = vpop.f32.mrb[0].mxu0
  %v1022 = vadd.f32 %v756, %v1021
  %v1023 = vpop.f32.mrb[0].mxu0
  %v1024 = vadd.f32 %v756, %v1023
  %v1025 = vpop.f32.mrb[0].mxu0
  %v1026 = vadd.f32 %v761, %v1025
  %v1027 = vpop.f32.mrb[0].mxu0
  %v1028 = vadd.f32 %v761, %v1027
  %1029 = vmatprep.mubr.bf16.mxu0 %v833
  %1030 = vmatmul.mubr.bf16.gmra.mrb[0].mxu0 %v819
  %v1031 = vpop.f32.mrb[0].mxu0
  %v1032 = vadd.f32 %v766, %v1031
  %v1033 = vpop.f32.mrb[0].mxu0
  %v1034 = vadd.f32 %v766, %v1033
  %v1035 = vpop.f32.mrb[0].mxu0
  %v1036 = vadd.f32 %v771, %v1035
  %v1037 = vpop.f32.mrb[0].mxu0
  %v1038 = vadd.f32 %v771, %v1037
  %1039 = vmatprep.mubr.bf16.mxu0 %v836
  %1040 = vmatmul.mubr.bf16.gmra.mrb[0].mxu0 %v821
  %v1041 = vpop.f32.mrb[0].mxu0
  %v1042 = vadd.f32 %v776, %v1041
  %v1043 = vpop.f32.mrb[0].mxu0
  %v1044 = vadd.f32 %v776, %v1043
  %v1045 = vpop.f32.mrb[0].mxu0
  %v1046 = vadd.f32 %v781, %v1045
  %v1047 = vpop.f32.mrb[0].mxu0
  %v1048 = vadd.f32 %v781, %v1047
  %1049 = vmatprep.mubr.bf16.mxu0 %v839
  %1050 = vmatmul.mubr.bf16.gmra.mrb[0].mxu0 %v823
  %v1051 = vpop.f32.mrb[0].mxu0
  %v1052 = vadd.f32 %v786, %v1051
  %v1053 = vpop.f32.mrb[0].mxu0
  %v1054 = vadd.f32 %v786, %v1053
  %v1055 = vpop.f32.mrb[0].mxu0
  %v1056 = vadd.f32 %v791, %v1055
  %v1057 = vpop.f32.mrb[0].mxu0
  %v1058 = vadd.f32 %v791, %v1057
  %1059 = vdwg.mxu0
  %1060 = vmatprep.subr.bf16.mxu0 %v704
  %1061 = vmatpush1.bf16.msra.mxu0 %v703
  %1062 = vmatprep.subr.bf16.mxu0 %v712
  %1063 = vmatpush1.bf16.msra.mxu0 %v711
  %1064 = vmatprep.subr.bf16.mxu0 %v713
  %1065 = vmatpush1.bf16.msra.mxu0 %v704
  %1066 = vmatprep.subr.bf16.mxu0 %v714
  %1067 = vmatpush1.bf16.msra.mxu0 %v712
  %1068 = vmatprep.subr.bf16.mxu0 %v715
  %1069 = vmatpush1.bf16.msra.mxu0 %v713
  %1070 = vmatprep.subr.bf16.mxu0 %v716
  %1071 = vmatpush1.bf16.msra.mxu0 %v714
  %1072 = vmatprep.subr.bf16.mxu0 %v717
  %1073 = vmatpush1.bf16.msra.mxu0 %v715
  %1074 = vmatprep.subr.bf16.mxu0 %v718
  %1075 = vmatpush1.bf16.msra.mxu0 %v716
  %1076 = vmatprep.subr.bf16.mxu0 %v719
  %1077 = vmatpush1.bf16.msra.mxu0 %v717
  %1078 = vmatprep.subr.bf16.mxu0 %v720
  %1079 = vmatpush1.bf16.msra.mxu0 %v718
  %1080 = vmatprep.subr.bf16.mxu0 %v728
  %1081 = vmatpush1.bf16.msra.mxu0 %v727
  %1082 = vmatprep.subr.bf16.mxu0 %v736
  %1083 = vmatpush1.bf16.msra.mxu0 %v735
  %1084 = vmatprep.subr.bf16.mxu0 0
  %1085 = vmatpush1.bf16.msra.mxu0 0
  %1086 = vmatprep.subr.bf16.mxu0 0
  %1087 = vmatpush1.bf16.msra.mxu0 0
  %1088 = vmatprep.subr.bf16.mxu0 0
  %1089 = vmatpush1.bf16.msra.mxu0 0
  %1090 = vmatprep.subr.bf16.mxu0 0
  %1091 = vmatpush1.bf16.msra.mxu0 0
  %1092 = vmatprep.mubr.bf16.mxu0 %v830
  %1093 = vmatmul.mubr.bf16.gmra.mrb[0].mxu0 %v817
  %v1094 = vpop.f32.mrb[0].mxu0
  %v1095 = vadd.f32 %v756, %v1094
  %v1096 = vpop.f32.mrb[0].mxu0
  %v1097 = vadd.f32 %v756, %v1096
  %v1098 = vpop.f32.mrb[0].mxu0
  %v1099 = vadd.f32 %v761, %v1098
  %v1100 = vpop.f32.mrb[0].mxu0
  %v1101 = vadd.f32 %v761, %v1100
  %1102 = vmatprep.mubr.bf16.mxu0 %v833
  %1103 = vmatmul.mubr.bf16.gmra.mrb[0].mxu0 %v819
  %v1104 = vpop.f32.mrb[0].mxu0
  %v1105 = vadd.f32 %v766, %v1104
  %v1106 = vpop.f32.mrb[0].mxu0
  %v1107 = vadd.f32 %v766, %v1106
  %v1108 = vpop.f32.mrb[0].mxu0
  %v1109 = vadd.f32 %v771, %v1108
  %v1110 = vpop.f32.mrb[0].mxu0
  %v1111 = vadd.f32 %v771, %v1110
  %1112 = vmatprep.mubr.bf16.mxu0 %v836
  %1113 = vmatmul.mubr.bf16.gmra.mrb[0].mxu0 %v821
  %v1114 = vpop.f32.mrb[0].mxu0
  %v1115 = vadd.f32 %v776, %v1114
  %v1116 = vpop.f32.mrb[0].mxu0
  %v1117 = vadd.f32 %v776, %v1116
  %v1118 = vpop.f32.mrb[0].mxu0
  %v1119 = vadd.f32 %v781, %v1118
  %v1120 = vpop.f32.mrb[0].mxu0
  %v1121 = vadd.f32 %v781, %v1120
  %1122 = vmatprep.mubr.bf16.mxu0 %v839
  %1123 = vmatmul.mubr.bf16.gmra.mrb[0].mxu0 %v823
  %v1124 = vpop.f32.mrb[0].mxu0
  %v1125 = vadd.f32 %v786, %v1124
  %v1126 = vpop.f32.mrb[0].mxu0
  %v1127 = vadd.f32 %v786, %v1126
  %v1128 = vpop.f32.mrb[0].mxu0
  %v1129 = vadd.f32 %v791, %v1128
  %v1130 = vpop.f32.mrb[0].mxu0
  %v1131 = vadd.f32 %v791, %v1130
  %1132 = vdwg.mxu0
  %v1133 = vmax.f32 %v876, 0.0
  %v1134 = vmax.f32 %v878, 0.0
  %v1135 = vmax.f32 %v949, 0.0
  %v1136 = vmax.f32 %v951, 0.0
  %v1137 = vmax.f32 %v1022, 0.0
  %v1138 = vmax.f32 %v1024, 0.0
  %v1139 = vmax.f32 %v1095, 0.0
  %v1140 = vmax.f32 %v1097, 0.0
  %v1141 = vmax.f32 %v880, 0.0
  %v1142 = vmax.f32 %v882, 0.0
  %v1143 = vmax.f32 %v953, 0.0
  %v1144 = vmax.f32 %v955, 0.0
  %v1145 = vmax.f32 %v1026, 0.0
  %v1146 = vmax.f32 %v1028, 0.0
  %v1147 = vmax.f32 %v1099, 0.0
  %v1148 = vmax.f32 %v1101, 0.0
  %v1149 = vmax.f32 %v886, 0.0
  %v1150 = vmax.f32 %v888, 0.0
  %v1151 = vmax.f32 %v959, 0.0
  %v1152 = vmax.f32 %v961, 0.0
  %v1153 = vmax.f32 %v1032, 0.0
  %v1154 = vmax.f32 %v1034, 0.0
  %v1155 = vmax.f32 %v1105, 0.0
  %v1156 = vmax.f32 %v1107, 0.0
  %v1157 = vmax.f32 %v890, 0.0
  %v1158 = vmax.f32 %v892, 0.0
  %v1159 = vmax.f32 %v963, 0.0
  %v1160 = vmax.f32 %v965, 0.0
  %v1161 = vmax.f32 %v1036, 0.0
  %v1162 = vmax.f32 %v1038, 0.0
  %v1163 = vmax.f32 %v1109, 0.0
  %v1164 = vmax.f32 %v1111, 0.0
  %v1165 = vmax.f32 %v896, 0.0
  %v1166 = vmax.f32 %v898, 0.0
  %v1167 = vmax.f32 %v969, 0.0
  %v1168 = vmax.f32 %v971, 0.0
  %v1169 = vmax.f32 %v1042, 0.0
  %v1170 = vmax.f32 %v1044, 0.0
  %v1171 = vmax.f32 %v1115, 0.0
  %v1172 = vmax.f32 %v1117, 0.0
  %v1173 = vmax.f32 %v900, 0.0
  %v1174 = vmax.f32 %v902, 0.0
  %v1175 = vmax.f32 %v973, 0.0
  %v1176 = vmax.f32 %v975, 0.0
  %v1177 = vmax.f32 %v1046, 0.0
  %v1178 = vmax.f32 %v1048, 0.0
  %v1179 = vmax.f32 %v1119, 0.0
  %v1180 = vmax.f32 %v1121, 0.0
  %v1181 = vmax.f32 %v906, 0.0
  %v1182 = vmax.f32 %v908, 0.0
  %v1183 = vmax.f32 %v979, 0.0
  %v1184 = vmax.f32 %v981, 0.0
  %v1185 = vmax.f32 %v1052, 0.0
  %v1186 = vmax.f32 %v1054, 0.0
  %v1187 = vmax.f32 %v1125, 0.0
  %v1188 = vmax.f32 %v1127, 0.0
  %v1189 = vmax.f32 %v910, 0.0
  %v1190 = vmax.f32 %v912, 0.0
  %v1191 = vmax.f32 %v983, 0.0
  %v1192 = vmax.f32 %v985, 0.0
  %v1193 = vmax.f32 %v1056, 0.0
  %v1194 = vmax.f32 %v1058, 0.0
  %v1195 = vmax.f32 %v1129, 0.0
  %v1196 = vmax.f32 %v1131, 0.0
  %v1197 = vmax.f32 %v1133, %v1137
  %v1198 = vmax.f32 %v1134, %v1138
  %v1199 = vmax.f32 %v1135, %v1139
  %v1200 = vmax.f32 %v1136, %v1140
  %v1201 = vmax.f32 %v1141, %v1145
  %v1202 = vmax.f32 %v1142, %v1146
  %v1203 = vmax.f32 %v1143, %v1147
  %v1204 = vmax.f32 %v1144, %v1148
  %v1205 = vmax.f32 %v1149, %v1153
  %v1206 = vmax.f32 %v1150, %v1154
  %v1207 = vmax.f32 %v1151, %v1155
  %v1208 = vmax.f32 %v1152, %v1156
  %v1209 = vmax.f32 %v1157, %v1161
  %v1210 = vmax.f32 %v1158, %v1162
  %v1211 = vmax.f32 %v1159, %v1163
  %v1212 = vmax.f32 %v1160, %v1164
  %v1213 = vmax.f32 %v1165, %v1169
  %v1214 = vmax.f32 %v1166, %v1170
  %v1215 = vmax.f32 %v1167, %v1171
  %v1216 = vmax.f32 %v1168, %v1172
  %v1217 = vmax.f32 %v1173, %v1177
  %v1218 = vmax.f32 %v1174, %v1178
  %v1219 = vmax.f32 %v1175, %v1179
  %v1220 = vmax.f32 %v1176, %v1180
  %v1221 = vmax.f32 %v1181, %v1185
  %v1222 = vmax.f32 %v1182, %v1186
  %v1223 = vmax.f32 %v1183, %v1187
  %v1224 = vmax.f32 %v1184, %v1188
  %v1225 = vmax.f32 %v1189, %v1193
  %v1226 = vmax.f32 %v1190, %v1194
  %v1227 = vmax.f32 %v1191, %v1195
  %v1228 = vmax.f32 %v1192, %v1196
  %v1229 = vmax.f32 %v1197, %v1199
  %v1230 = vmax.f32 %v1198, %v1200
  %v1231 = vmax.f32 %v1201, %v1203
  %v1232 = vmax.f32 %v1202, %v1204
  %v1233 = vmax.f32 %v1205, %v1207
  %v1234 = vmax.f32 %v1206, %v1208
  %v1235 = vmax.f32 %v1209, %v1211
  %v1236 = vmax.f32 %v1210, %v1212
  %v1237 = vmax.f32 %v1213, %v1215
  %v1238 = vmax.f32 %v1214, %v1216
  %v1239 = vmax.f32 %v1217, %v1219
  %v1240 = vmax.f32 %v1218, %v1220
  %v1241 = vmax.f32 %v1221, %v1223
  %v1242 = vmax.f32 %v1222, %v1224
  %v1243 = vmax.f32 %v1225, %v1227
  %v1244 = vmax.f32 %v1226, %v1228
  %v1245 = vmax.f32 %v1229, %v1230
  %v1246 = vmax.f32 %v1231, %v1232
  %v1247 = vmax.f32 %v1233, %v1234
  %v1248 = vmax.f32 %v1235, %v1236
  %v1249 = vmax.f32 %v1237, %v1238
  %v1250 = vmax.f32 %v1239, %v1240
  %v1251 = vmax.f32 %v1241, %v1242
  %v1252 = vmax.f32 %v1243, %v1244
  %v1253 = vld [vmem:[%s5] sm:$0x1]
  %v1254 = vpack.c.bf16 %v1246, %v1245
  %v1255 = vpack.c.bf16 %v1248, %v1247
  %v1256 = vpack.c.bf16 %v1250, %v1249
  %v1257 = vpack.c.bf16 %v1252, %v1251
  %v1258 = vld [vmem:[#allocation3] sm:$0x1]
  %1260 = vset.pattern.permute.xlu0 0
  %1261 = vperm.xlu0 %1260, %v1258
  %v1262 = vpop.permute.xlu0 %1261
  %v1264 = vlaneseq
  %v1265 = vshrl.u32 %v1264, 7
  %v1266 = vsub.s32 0, %v1265
  %v1267 = vrot.slane %v1262, %v1266
  %v1269 = vsel %vm112, %v1253, 0
  %1271 = vmatprep.subr.bf16.mxu0 0
  %1272 = vmatpush1.bf16.msra.mxu0 %v1254
  %1273 = vmatprep.subr.bf16.mxu0 0
  %1274 = vmatpush1.bf16.msra.mxu0 %v1255
  %1275 = vmatprep.subr.bf16.mxu0 0
  %1276 = vmatpush1.bf16.msra.mxu0 %v1256
  %1277 = vmatprep.subr.bf16.mxu0 0
  %1278 = vmatpush1.bf16.msra.mxu0 %v1257
  %1279 = vmatprep.subr.bf16.mxu0 0
  %1280 = vmatpush1.bf16.msra.mxu0 0
  %1281 = vmatprep.subr.bf16.mxu0 0
  %1282 = vmatpush1.bf16.msra.mxu0 0
  %1283 = vmatprep.subr.bf16.mxu0 0
  %1284 = vmatpush1.bf16.msra.mxu0 0
  %1285 = vmatprep.subr.bf16.mxu0 0
  %1286 = vmatpush1.bf16.msra.mxu0 0
  %1287 = vmatprep.subr.bf16.mxu0 0
  %1288 = vmatpush1.bf16.msra.mxu0 0
  %1289 = vmatprep.subr.bf16.mxu0 0
  %1290 = vmatpush1.bf16.msra.mxu0 0
  %1291 = vmatprep.subr.bf16.mxu0 0
  %1292 = vmatpush1.bf16.msra.mxu0 0
  %1293 = vmatprep.subr.bf16.mxu0 0
  %1294 = vmatpush1.bf16.msra.mxu0 0
  %1295 = vmatprep.subr.bf16.mxu0 0
  %1296 = vmatpush1.bf16.msra.mxu0 0
  %1297 = vmatprep.subr.bf16.mxu0 0
  %1298 = vmatpush1.bf16.msra.mxu0 0
  %1299 = vmatprep.subr.bf16.mxu0 0
  %1300 = vmatpush1.bf16.msra.mxu0 0
  %1301 = vmatprep.subr.bf16.mxu0 0
  %1302 = vmatpush1.bf16.msra.mxu0 0
  %1303 = vmatprep.mubr.bf16.mxu0 0
  %1304 = vmatmul.mubr.bf16.gmra.mrb[0].mxu0 %v1269
  %v1305 = vpop.f32.mrb[0].mxu0
  %v1306 = vadd.f32 %v1267, %v1305
  %v1307 = vpop.f32.mrb[0].mxu0
  %v1308 = vpop.f32.mrb[0].mxu0
  %v1309 = vpop.f32.mrb[0].mxu0
  %1310 = vdwg.mxu0
  %v1311 = vsub.f32 0.0, %v1306
  %v1312 = vmul.f32 %v1311, 1.442695
  %v1313 = vpow.pop %v1312
  %v1314 = vadd.f32 %v1313, 1.0
  %v1315 = vrcp.pop %v1314
  %v1316 = vmul.f32 1.0, %v1315
  %1317 = vst [vmem:[%s7] sm:$0x1] %v1316
  // Predicated region
  $region30: #{forward.1} parent=0 // pred_check
    _
  $region31: #{forward.1} parent=0 // pred_check_branch
    %1319 = sbr.rel (0) target = $region33
  $region32: #{forward.1} parent=0 // pred_region
    _
  $region33: #{forward.1} parent=0 // pred_fallthru
    _
  // Predicated region
  $region34: #{forward.1} parent=0 // pred_check
    _
  $region35: #{forward.1} parent=0 // pred_check_branch
    %1321 = sbr.rel (0) target = $region37
  $region36: #{forward.1} parent=0 // pred_region
    _
  $region37: #{forward.1} parent=0 // pred_fallthru
    _

</llo_original>
